<compile_context>
chip_gen: v7x
topology: tpu7x:2x2x1
jax: 0.10.0
libtpu: 0.0.40
codegen_flags: <defaults>
</compile_context>

<pallas_src>
import jax
import jax.numpy as jnp
from jax.experimental import pallas as pl
from jax.experimental.pallas import tpu as pltpu


# ----------------------------- Pallas kernel --------------------------------

def _make_stage_kernel(num_layers, T, C, Dmax):
    """Fused: in-1x1 conv -> num_layers DilatedResidualLayers -> masked out-1x1."""

    def kernel(len_ref,                      # (B,) int32 valid lengths (SMEM prefetch)
               x_ref,                        # (1, T, Cin)
               w_in_ref, b_in_ref,           # (Cin, C), (1, C)
               wd_ref, bd_ref,               # (L, 3C, C), (L, 1, C)
               w1_ref, b1_ref,               # (L, C, C),  (L, 1, C)
               wo_ref, bo_ref,               # (C, ncls),  (1, ncls)
               o_ref,                        # (1, T, ncls)
               act_ref, taps_ref):           # scratch: (T + 2*Dmax, C), (T, 3C) f32
        b = pl.program_id(0)
        valid = len_ref[b]
        # In-kernel prefix mask == mask[:, 0, :] of the MS-TCN mask tensor.
        mask = (jax.lax.broadcasted_iota(jnp.int32, (T, 1), 0)
                < valid).astype(jnp.float32)

        # --- input 1x1 conv (unmasked, as in the PyTorch module) ---
        h = jnp.dot(x_ref[0], w_in_ref[...],
                    preferred_element_type=jnp.float32) + b_in_ref[...]

        # Activation lives in a zero-haloed VMEM scratch for the whole stage;
        # the halo of width Dmax provides the conv zero padding for every layer.
        act_ref[...] = jnp.zeros_like(act_ref)
        act_ref[Dmax:Dmax + T, :] = h

        for i in range(num_layers):
            d = 2 ** i
            center = act_ref[Dmax:Dmax + T, :]
            # K = 3C fused tap operand: [x(t-d), x(t), x(t+d)] along lanes.
            taps_ref[:, 0:C] = act_ref[Dmax - d:Dmax - d + T, :]
            taps_ref[:, C:2 * C] = center
            taps_ref[:, 2 * C:3 * C] = act_ref[Dmax + d:Dmax + d + T, :]
            z = jnp.dot(taps_ref[...], wd_ref[i],
                        preferred_element_type=jnp.float32) + bd_ref[i]
            z = jnp.maximum(z, 0.0)                                    # ReLU
            z = jnp.dot(z, w1_ref[i],
                        preferred_element_type=jnp.float32) + b1_ref[i]
            # TODO(synk): nn.Dropout() is treated as identity (inference mode).
            act_ref[Dmax:Dmax + T, :] = (center + z) * mask

        out = jnp.dot(act_ref[Dmax:Dmax + T, :], wo_ref[...],
                      preferred_element_type=jnp.float32) + bo_ref[...]
        o_ref[0] = (out * mask).astype(o_ref.dtype)

    return kernel


# ------------------------------ Wrapper --------------------------------------

def single_stage_model(params, x_nct, mask_nct):
    """x_nct: (B, dim, T), mask_nct: (B, num_classes, T). Returns (B, num_classes, T)."""
    B, Cin, T = x_nct.shape
    C = params["w_in"].shape[1]
    ncls = params["w_out"].shape[1]
    num_layers = len(params["layers"])
    Dmax = 2 ** (num_layers - 1) if num_layers > 0 else 1
    Tpad = T + 2 * Dmax

    # Channels-last activations so channels sit on the lane axis.
    x_btc = jnp.transpose(x_nct, (0, 2, 1))                      # (B, T, Cin)

    # MS-TCN masks are 0/1 prefix masks over valid frames: compress to lengths
    # and rebuild the mask in-kernel (removes a lane-sparse DMA stream).
    lengths = jnp.sum((mask_nct[:, 0, :] > 0), axis=-1).astype(jnp.int32)  # (B,)

    # Stack per-layer weights; fuse the 3 dilated taps along K -> (L, 3C, C).
    wd = jnp.stack([lp["w_dil"] for lp in params["layers"]]).reshape(
        num_layers, 3 * C, C)
    bd = jnp.stack([lp["b_dil"] for lp in params["layers"]])      # (L, 1, C)
    w1 = jnp.stack([lp["w_1x1"] for lp in params["layers"]])      # (L, C, C)
    b1 = jnp.stack([lp["b_1x1"] for lp in params["layers"]])      # (L, 1, C)

    kernel = _make_stage_kernel(num_layers, T, C, Dmax)

    flops = B * (2 * T * Cin * C
                 + num_layers * (2 * T * (3 * C) * C + 2 * T * C * C)
                 + 2 * T * C * ncls)
    weight_elems = (Cin * C + C
                    + num_layers * (3 * C * C + C + C * C + C)
                    + C * ncls + ncls)
    bytes_accessed = 4 * (B * T * Cin + B * T * ncls + weight_elems + B)
    cost = pl.CostEstimate(flops=int(flops), transcendentals=0,
                           bytes_accessed=int(bytes_accessed))

    grid_spec = pltpu.PrefetchScalarGridSpec(
        num_scalar_prefetch=1,
        grid=(B,),
        in_specs=[
            pl.BlockSpec((1, T, Cin), lambda b, L: (b, 0, 0)),
            pl.BlockSpec((Cin, C), lambda b, L: (0, 0)),
            pl.BlockSpec((1, C), lambda b, L: (0, 0)),
            pl.BlockSpec((num_layers, 3 * C, C), lambda b, L: (0, 0, 0)),
            pl.BlockSpec((num_layers, 1, C), lambda b, L: (0, 0, 0)),
            pl.BlockSpec((num_layers, C, C), lambda b, L: (0, 0, 0)),
            pl.BlockSpec((num_layers, 1, C), lambda b, L: (0, 0, 0)),
            pl.BlockSpec((C, ncls), lambda b, L: (0, 0)),
            pl.BlockSpec((1, ncls), lambda b, L: (0, 0)),
        ],
        out_specs=pl.BlockSpec((1, T, ncls), lambda b, L: (b, 0, 0)),
        scratch_shapes=[
            pltpu.VMEM((Tpad, C), jnp.float32),      # zero-haloed activation
            pltpu.VMEM((T, 3 * C), jnp.float32),     # fused K=3C tap operand
        ],
    )

    out = pl.pallas_call(
        kernel,
        out_shape=jax.ShapeDtypeStruct((B, T, ncls), jnp.float32),
        grid_spec=grid_spec,
        compiler_params=pltpu.CompilerParams(
            dimension_semantics=("parallel",),
            vmem_limit_bytes=32 * 1024 * 1024,
        ),
        cost_estimate=cost,
    )(lengths, x_btc, params["w_in"], params["b_in"], wd, bd, w1, b1,
      params["w_out"], params["b_out"])

    return jnp.transpose(out, (0, 2, 1))                          # back to (B, C, T)


# --------------------------- Pure-JAX reference -----------------------------

def reference(params, x_nct, mask_nct):
    x = jnp.transpose(x_nct, (0, 2, 1))
    m = jnp.transpose(mask_nct[:, 0:1, :], (0, 2, 1))
    out = x @ params["w_in"] + params["b_in"]
    T = out.shape[1]
    for i, lp in enumerate(params["layers"]):
        d = 2 ** i
        xp = jnp.pad(out, ((0, 0), (d, d), (0, 0)))
        h = (xp[:, 0:T] @ lp["w_dil"][0]
             + xp[:, d:d + T] @ lp["w_dil"][1]
             + xp[:, 2 * d:2 * d + T] @ lp["w_dil"][2] + lp["b_dil"])
        h = jnp.maximum(h, 0.0)
        h = h @ lp["w_1x1"] + lp["b_1x1"]
        out = (out + h) * m
    out = (out @ params["w_out"] + params["b_out"]) * m
    return jnp.transpose(out, (0, 2, 1))


# ------------------------------ Param init ----------------------------------

def init_params(key, num_layers, num_f_maps, dim, num_classes):
    ks = jax.random.split(key, 4 + 4 * num_layers)
    scale = 0.1
    params = {
        "w_in": scale * jax.random.normal(ks[0], (dim, num_f_maps), jnp.float32),
        "b_in": scale * jax.random.normal(ks[1], (1, num_f_maps), jnp.float32),
        "w_out": scale * jax.random.normal(ks[2], (num_f_maps, num_classes), jnp.float32),
        "b_out": scale * jax.random.normal(ks[3], (1, num_classes), jnp.float32),
        "layers": [],
    }
    for i in range(num_layers):
        k0, k1, k2, k3 = ks[4 + 4 * i:8 + 4 * i]
        params["layers"].append({
            "w_dil": scale * jax.random.normal(k0, (3, num_f_maps, num_f_maps), jnp.float32),
            "b_dil": scale * jax.random.normal(k1, (1, num_f_maps), jnp.float32),
            "w_1x1": scale * jax.random.normal(k2, (num_f_maps, num_f_maps), jnp.float32),
            "b_1x1": scale * jax.random.normal(k3, (1, num_f_maps), jnp.float32),
        })
    return params


# --------------------------------- Main --------------------------------------

if __name__ == "__main__":
    B, dim, T = 2, 8, 16
    num_layers, num_f_maps, num_classes = 3, 32, 6

    key = jax.random.PRNGKey(0)
    kx, kp = jax.random.split(key)
    x = jax.random.normal(kx, (B, dim, T), jnp.float32)

    # mask like MS-TCN: 1 for valid frames, 0 for padding; second sample shorter.
    lengths = jnp.array([T, 12])
    valid = (jnp.arange(T)[None, :] < lengths[:, None]).astype(jnp.float32)  # (B, T)
    mask = jnp.broadcast_to(valid[:, None, :], (B, num_classes, T))

    params = init_params(kp, num_layers, num_f_maps, dim, num_classes)

    out = single_stage_model(params, x, mask)
    out = jax.block_until_ready(out)

    ref = reference(params, x, mask)
    assert out.shape == (B, num_classes, T)
    assert jnp.allclose(out, ref, atol=1e-4, rtol=1e-4), "mismatch vs reference"

    print("KERNEL_OK")
</pallas_src>

<mosaic_0001>
module attributes {stable_mosaic.version = 11 : i64} {
  func.func @kernel(%arg0: i32, %arg1: memref<2xi32, #tpu.memory_space<smem>>, %arg2: memref<1x16x8xf32, #tpu.memory_space<vmem>>, %arg3: memref<8x32xf32, #tpu.memory_space<vmem>>, %arg4: memref<1x32xf32, #tpu.memory_space<vmem>>, %arg5: memref<3x96x32xf32, #tpu.memory_space<vmem>>, %arg6: memref<3x1x32xf32, #tpu.memory_space<vmem>>, %arg7: memref<3x32x32xf32, #tpu.memory_space<vmem>>, %arg8: memref<3x1x32xf32, #tpu.memory_space<vmem>>, %arg9: memref<32x6xf32, #tpu.memory_space<vmem>>, %arg10: memref<1x6xf32, #tpu.memory_space<vmem>>, %arg11: memref<1x16x6xf32, #tpu.memory_space<vmem>>, %arg12: memref<24x32xf32, #tpu.memory_space<vmem>>, %arg13: memref<16x96xf32, #tpu.memory_space<vmem>>) attributes {dimension_semantics = [#tpu.dimension_semantics<parallel>], iteration_bounds = array<i64: 2>, scalar_prefetch = 1 : i64, scratch_operands = 2 : i64, tpu.core_type = #tpu.core_type<tc>, window_params = [{transform_indices = @transform_0, window_bounds = array<i64: 1, 16, 8>}, {pipeline_mode = #tpu.pipeline_mode<synchronous>, transform_indices = @transform_1, window_bounds = array<i64: 8, 32>}, {pipeline_mode = #tpu.pipeline_mode<synchronous>, transform_indices = @transform_2, window_bounds = array<i64: 1, 32>}, {pipeline_mode = #tpu.pipeline_mode<synchronous>, transform_indices = @transform_3, window_bounds = array<i64: 3, 96, 32>}, {pipeline_mode = #tpu.pipeline_mode<synchronous>, transform_indices = @transform_4, window_bounds = array<i64: 3, 1, 32>}, {pipeline_mode = #tpu.pipeline_mode<synchronous>, transform_indices = @transform_5, window_bounds = array<i64: 3, 32, 32>}, {pipeline_mode = #tpu.pipeline_mode<synchronous>, transform_indices = @transform_6, window_bounds = array<i64: 3, 1, 32>}, {pipeline_mode = #tpu.pipeline_mode<synchronous>, transform_indices = @transform_7, window_bounds = array<i64: 32, 6>}, {pipeline_mode = #tpu.pipeline_mode<synchronous>, transform_indices = @transform_8, window_bounds = array<i64: 1, 6>}, {transform_indices = @transform_9, window_bounds = array<i64: 1, 16, 6>}]} {
    %0 = arith.index_cast %arg0 : i32 to index
    %1 = memref.load %arg1[%0] : memref<2xi32, #tpu.memory_space<smem>>
    %2 = tpu.iota {dimensions = array<i32: 0>} : vector<16x1xi32>
    %3 = vector.broadcast %1 : i32 to vector<16x1xi32>
    %4 = arith.cmpi slt, %2, %3 : vector<16x1xi32>
    %5 = arith.extui %4 : vector<16x1xi1> to vector<16x1xi32>
    %6 = arith.sitofp %5 : vector<16x1xi32> to vector<16x1xf32>
    %c0 = arith.constant 0 : index
    %c0_0 = arith.constant 0 : index
    %c0_1 = arith.constant 0 : index
    %7 = vector.load %arg2[%c0, %c0_0, %c0_1] : memref<1x16x8xf32, #tpu.memory_space<vmem>>, vector<1x16x8xf32>
    %8 = vector.shape_cast %7 : vector<1x16x8xf32> to vector<16x8xf32>
    %c0_2 = arith.constant 0 : index
    %c0_3 = arith.constant 0 : index
    %9 = vector.load %arg3[%c0_2, %c0_3] : memref<8x32xf32, #tpu.memory_space<vmem>>, vector<8x32xf32>
    %cst = arith.constant dense<0.000000e+00> : vector<16x32xf32>
    %10 = tpu.matmul %8, %9, %cst {dimension_numbers = #tpu.dot_dimension_numbers<[1], [0], [0], [1], [0, 0, 1, 1], [], []>} : vector<16x8xf32>, vector<8x32xf32>, vector<16x32xf32> -> vector<16x32xf32>
    %c0_4 = arith.constant 0 : index
    %c0_5 = arith.constant 0 : index
    %11 = vector.load %arg4[%c0_4, %c0_5] : memref<1x32xf32, #tpu.memory_space<vmem>>, vector<1x32xf32>
    %12 = vector.broadcast %11 : vector<1x32xf32> to vector<16x32xf32>
    %13 = arith.addf %10, %12 : vector<16x32xf32>
    %cst_6 = arith.constant 0.000000e+00 : f32
    %14 = vector.broadcast %cst_6 : f32 to vector<24x32xf32>
    %c0_7 = arith.constant 0 : index
    %c0_8 = arith.constant 0 : index
    %15 = vector.load %arg12[%c0_7, %c0_8] : memref<24x32xf32, #tpu.memory_space<vmem>>, vector<24x32xf32>
    tpu.vector_store %arg12[%c0_7, %c0_8], %14 {strides = array<i32>} : memref<24x32xf32, #tpu.memory_space<vmem>>, vector<24x32xf32>,
    %c4 = arith.constant 4 : index
    %c0_9 = arith.constant 0 : index
    %16 = vector.load %arg12[%c4, %c0_9] : memref<24x32xf32, #tpu.memory_space<vmem>>, vector<16x32xf32>
    tpu.vector_store %arg12[%c4, %c0_9], %13 {strides = array<i32>} : memref<24x32xf32, #tpu.memory_space<vmem>>, vector<16x32xf32>,
    %c4_10 = arith.constant 4 : index
    %c0_11 = arith.constant 0 : index
    %17 = vector.load %arg12[%c4_10, %c0_11] : memref<24x32xf32, #tpu.memory_space<vmem>>, vector<16x32xf32>
    %c3 = arith.constant 3 : index
    %c0_12 = arith.constant 0 : index
    %18 = vector.load %arg12[%c3, %c0_12] : memref<24x32xf32, #tpu.memory_space<vmem>>, vector<16x32xf32>
    %c0_13 = arith.constant 0 : index
    %c0_14 = arith.constant 0 : index
    %19 = vector.load %arg13[%c0_13, %c0_14] : memref<16x96xf32, #tpu.memory_space<vmem>>, vector<16x32xf32>
    tpu.vector_store %arg13[%c0_13, %c0_14], %18 {strides = array<i32>} : memref<16x96xf32, #tpu.memory_space<vmem>>, vector<16x32xf32>,
    %c0_15 = arith.constant 0 : index
    %c32 = arith.constant 32 : index
    %20 = vector.load %arg13[%c0_15, %c32] : memref<16x96xf32, #tpu.memory_space<vmem>>, vector<16x32xf32>
    tpu.vector_store %arg13[%c0_15, %c32], %17 {strides = array<i32>} : memref<16x96xf32, #tpu.memory_space<vmem>>, vector<16x32xf32>,
    %c5 = arith.constant 5 : index
    %c0_16 = arith.constant 0 : index
    %21 = vector.load %arg12[%c5, %c0_16] : memref<24x32xf32, #tpu.memory_space<vmem>>, vector<16x32xf32>
    %c0_17 = arith.constant 0 : index
    %c64 = arith.constant 64 : index
    %22 = vector.load %arg13[%c0_17, %c64] : memref<16x96xf32, #tpu.memory_space<vmem>>, vector<16x32xf32>
    tpu.vector_store %arg13[%c0_17, %c64], %21 {strides = array<i32>} : memref<16x96xf32, #tpu.memory_space<vmem>>, vector<16x32xf32>,
    %c0_18 = arith.constant 0 : index
    %c0_19 = arith.constant 0 : index
    %23 = vector.load %arg13[%c0_18, %c0_19] : memref<16x96xf32, #tpu.memory_space<vmem>>, vector<16x96xf32>
    %c0_20 = arith.constant 0 : index
    %c0_21 = arith.constant 0 : index
    %c0_22 = arith.constant 0 : index
    %24 = vector.load %arg5[%c0_20, %c0_21, %c0_22] : memref<3x96x32xf32, #tpu.memory_space<vmem>>, vector<1x96x32xf32>
    %25 = vector.shape_cast %24 : vector<1x96x32xf32> to vector<96x32xf32>
    %cst_23 = arith.constant dense<0.000000e+00> : vector<16x32xf32>
    %26 = tpu.matmul %23, %25, %cst_23 {dimension_numbers = #tpu.dot_dimension_numbers<[1], [0], [0], [1], [0, 0, 1, 1], [], []>} : vector<16x96xf32>, vector<96x32xf32>, vector<16x32xf32> -> vector<16x32xf32>
    %c0_24 = arith.constant 0 : index
    %c0_25 = arith.constant 0 : index
    %c0_26 = arith.constant 0 : index
    %27 = vector.load %arg6[%c0_24, %c0_25, %c0_26] : memref<3x1x32xf32, #tpu.memory_space<vmem>>, vector<1x1x32xf32>
    %28 = vector.shape_cast %27 : vector<1x1x32xf32> to vector<1x32xf32>
    %29 = vector.broadcast %28 : vector<1x32xf32> to vector<16x32xf32>
    %30 = arith.addf %26, %29 : vector<16x32xf32>
    %cst_27 = arith.constant 0.000000e+00 : f32
    %31 = vector.broadcast %cst_27 : f32 to vector<16x32xf32>
    %32 = arith.maximumf %30, %31 : vector<16x32xf32>
    %c0_28 = arith.constant 0 : index
    %c0_29 = arith.constant 0 : index
    %c0_30 = arith.constant 0 : index
    %33 = vector.load %arg7[%c0_28, %c0_29, %c0_30] : memref<3x32x32xf32, #tpu.memory_space<vmem>>, vector<1x32x32xf32>
    %34 = vector.shape_cast %33 : vector<1x32x32xf32> to vector<32x32xf32>
    %cst_31 = arith.constant dense<0.000000e+00> : vector<16x32xf32>
    %35 = tpu.matmul %32, %34, %cst_31 {dimension_numbers = #tpu.dot_dimension_numbers<[1], [0], [0], [1], [0, 0, 1, 1], [], []>} : vector<16x32xf32>, vector<32x32xf32>, vector<16x32xf32> -> vector<16x32xf32>
    %c0_32 = arith.constant 0 : index
    %c0_33 = arith.constant 0 : index
    %c0_34 = arith.constant 0 : index
    %36 = vector.load %arg8[%c0_32, %c0_33, %c0_34] : memref<3x1x32xf32, #tpu.memory_space<vmem>>, vector<1x1x32xf32>
    %37 = vector.shape_cast %36 : vector<1x1x32xf32> to vector<1x32xf32>
    %38 = vector.broadcast %37 : vector<1x32xf32> to vector<16x32xf32>
    %39 = arith.addf %35, %38 : vector<16x32xf32>
    %40 = arith.addf %17, %39 : vector<16x32xf32>
    %41 = vector.broadcast %6 : vector<16x1xf32> to vector<16x32xf32>
    %42 = arith.mulf %40, %41 : vector<16x32xf32>
    %c4_35 = arith.constant 4 : index
    %c0_36 = arith.constant 0 : index
    %43 = vector.load %arg12[%c4_35, %c0_36] : memref<24x32xf32, #tpu.memory_space<vmem>>, vector<16x32xf32>
    tpu.vector_store %arg12[%c4_35, %c0_36], %42 {strides = array<i32>} : memref<24x32xf32, #tpu.memory_space<vmem>>, vector<16x32xf32>,
    %c4_37 = arith.constant 4 : index
    %c0_38 = arith.constant 0 : index
    %44 = vector.load %arg12[%c4_37, %c0_38] : memref<24x32xf32, #tpu.memory_space<vmem>>, vector<16x32xf32>
    %c2 = arith.constant 2 : index
    %c0_39 = arith.constant 0 : index
    %45 = vector.load %arg12[%c2, %c0_39] : memref<24x32xf32, #tpu.memory_space<vmem>>, vector<16x32xf32>
    %c0_40 = arith.constant 0 : index
    %c0_41 = arith.constant 0 : index
    %46 = vector.load %arg13[%c0_40, %c0_41] : memref<16x96xf32, #tpu.memory_space<vmem>>, vector<16x32xf32>
    tpu.vector_store %arg13[%c0_40, %c0_41], %45 {strides = array<i32>} : memref<16x96xf32, #tpu.memory_space<vmem>>, vector<16x32xf32>,
    %c0_42 = arith.constant 0 : index
    %c32_43 = arith.constant 32 : index
    %47 = vector.load %arg13[%c0_42, %c32_43] : memref<16x96xf32, #tpu.memory_space<vmem>>, vector<16x32xf32>
    tpu.vector_store %arg13[%c0_42, %c32_43], %44 {strides = array<i32>} : memref<16x96xf32, #tpu.memory_space<vmem>>, vector<16x32xf32>,
    %c6 = arith.constant 6 : index
    %c0_44 = arith.constant 0 : index
    %48 = vector.load %arg12[%c6, %c0_44] : memref<24x32xf32, #tpu.memory_space<vmem>>, vector<16x32xf32>
    %c0_45 = arith.constant 0 : index
    %c64_46 = arith.constant 64 : index
    %49 = vector.load %arg13[%c0_45, %c64_46] : memref<16x96xf32, #tpu.memory_space<vmem>>, vector<16x32xf32>
    tpu.vector_store %arg13[%c0_45, %c64_46], %48 {strides = array<i32>} : memref<16x96xf32, #tpu.memory_space<vmem>>, vector<16x32xf32>,
    %c0_47 = arith.constant 0 : index
    %c0_48 = arith.constant 0 : index
    %50 = vector.load %arg13[%c0_47, %c0_48] : memref<16x96xf32, #tpu.memory_space<vmem>>, vector<16x96xf32>
    %c1 = arith.constant 1 : index
    %c0_49 = arith.constant 0 : index
    %c0_50 = arith.constant 0 : index
    %51 = vector.load %arg5[%c1, %c0_49, %c0_50] : memref<3x96x32xf32, #tpu.memory_space<vmem>>, vector<1x96x32xf32>
    %52 = vector.shape_cast %51 : vector<1x96x32xf32> to vector<96x32xf32>
    %cst_51 = arith.constant dense<0.000000e+00> : vector<16x32xf32>
    %53 = tpu.matmul %50, %52, %cst_51 {dimension_numbers = #tpu.dot_dimension_numbers<[1], [0], [0], [1], [0, 0, 1, 1], [], []>} : vector<16x96xf32>, vector<96x32xf32>, vector<16x32xf32> -> vector<16x32xf32>
    %c1_52 = arith.constant 1 : index
    %c0_53 = arith.constant 0 : index
    %c0_54 = arith.constant 0 : index
    %54 = vector.load %arg6[%c1_52, %c0_53, %c0_54] : memref<3x1x32xf32, #tpu.memory_space<vmem>>, vector<1x1x32xf32>
    %55 = vector.shape_cast %54 : vector<1x1x32xf32> to vector<1x32xf32>
    %56 = vector.broadcast %55 : vector<1x32xf32> to vector<16x32xf32>
    %57 = arith.addf %53, %56 : vector<16x32xf32>
    %cst_55 = arith.constant 0.000000e+00 : f32
    %58 = vector.broadcast %cst_55 : f32 to vector<16x32xf32>
    %59 = arith.maximumf %57, %58 : vector<16x32xf32>
    %c1_56 = arith.constant 1 : index
    %c0_57 = arith.constant 0 : index
    %c0_58 = arith.constant 0 : index
    %60 = vector.load %arg7[%c1_56, %c0_57, %c0_58] : memref<3x32x32xf32, #tpu.memory_space<vmem>>, vector<1x32x32xf32>
    %61 = vector.shape_cast %60 : vector<1x32x32xf32> to vector<32x32xf32>
    %cst_59 = arith.constant dense<0.000000e+00> : vector<16x32xf32>
    %62 = tpu.matmul %59, %61, %cst_59 {dimension_numbers = #tpu.dot_dimension_numbers<[1], [0], [0], [1], [0, 0, 1, 1], [], []>} : vector<16x32xf32>, vector<32x32xf32>, vector<16x32xf32> -> vector<16x32xf32>
    %c1_60 = arith.constant 1 : index
    %c0_61 = arith.constant 0 : index
    %c0_62 = arith.constant 0 : index
    %63 = vector.load %arg8[%c1_60, %c0_61, %c0_62] : memref<3x1x32xf32, #tpu.memory_space<vmem>>, vector<1x1x32xf32>
    %64 = vector.shape_cast %63 : vector<1x1x32xf32> to vector<1x32xf32>
    %65 = vector.broadcast %64 : vector<1x32xf32> to vector<16x32xf32>
    %66 = arith.addf %62, %65 : vector<16x32xf32>
    %67 = arith.addf %44, %66 : vector<16x32xf32>
    %68 = vector.broadcast %6 : vector<16x1xf32> to vector<16x32xf32>
    %69 = arith.mulf %67, %68 : vector<16x32xf32>
    %c4_63 = arith.constant 4 : index
    %c0_64 = arith.constant 0 : index
    %70 = vector.load %arg12[%c4_63, %c0_64] : memref<24x32xf32, #tpu.memory_space<vmem>>, vector<16x32xf32>
    tpu.vector_store %arg12[%c4_63, %c0_64], %69 {strides = array<i32>} : memref<24x32xf32, #tpu.memory_space<vmem>>, vector<16x32xf32>,
    %c4_65 = arith.constant 4 : index
    %c0_66 = arith.constant 0 : index
    %71 = vector.load %arg12[%c4_65, %c0_66] : memref<24x32xf32, #tpu.memory_space<vmem>>, vector<16x32xf32>
    %c0_67 = arith.constant 0 : index
    %c0_68 = arith.constant 0 : index
    %72 = vector.load %arg12[%c0_67, %c0_68] : memref<24x32xf32, #tpu.memory_space<vmem>>, vector<16x32xf32>
    %c0_69 = arith.constant 0 : index
    %c0_70 = arith.constant 0 : index
    %73 = vector.load %arg13[%c0_69, %c0_70] : memref<16x96xf32, #tpu.memory_space<vmem>>, vector<16x32xf32>
    tpu.vector_store %arg13[%c0_69, %c0_70], %72 {strides = array<i32>} : memref<16x96xf32, #tpu.memory_space<vmem>>, vector<16x32xf32>,
    %c0_71 = arith.constant 0 : index
    %c32_72 = arith.constant 32 : index
    %74 = vector.load %arg13[%c0_71, %c32_72] : memref<16x96xf32, #tpu.memory_space<vmem>>, vector<16x32xf32>
    tpu.vector_store %arg13[%c0_71, %c32_72], %71 {strides = array<i32>} : memref<16x96xf32, #tpu.memory_space<vmem>>, vector<16x32xf32>,
    %c8 = arith.constant 8 : index
    %c0_73 = arith.constant 0 : index
    %75 = vector.load %arg12[%c8, %c0_73] : memref<24x32xf32, #tpu.memory_space<vmem>>, vector<16x32xf32>
    %c0_74 = arith.constant 0 : index
    %c64_75 = arith.constant 64 : index
    %76 = vector.load %arg13[%c0_74, %c64_75] : memref<16x96xf32, #tpu.memory_space<vmem>>, vector<16x32xf32>
    tpu.vector_store %arg13[%c0_74, %c64_75], %75 {strides = array<i32>} : memref<16x96xf32, #tpu.memory_space<vmem>>, vector<16x32xf32>,
    %c0_76 = arith.constant 0 : index
    %c0_77 = arith.constant 0 : index
    %77 = vector.load %arg13[%c0_76, %c0_77] : memref<16x96xf32, #tpu.memory_space<vmem>>, vector<16x96xf32>
    %c2_78 = arith.constant 2 : index
    %c0_79 = arith.constant 0 : index
    %c0_80 = arith.constant 0 : index
    %78 = vector.load %arg5[%c2_78, %c0_79, %c0_80] : memref<3x96x32xf32, #tpu.memory_space<vmem>>, vector<1x96x32xf32>
    %79 = vector.shape_cast %78 : vector<1x96x32xf32> to vector<96x32xf32>
    %cst_81 = arith.constant dense<0.000000e+00> : vector<16x32xf32>
    %80 = tpu.matmul %77, %79, %cst_81 {dimension_numbers = #tpu.dot_dimension_numbers<[1], [0], [0], [1], [0, 0, 1, 1], [], []>} : vector<16x96xf32>, vector<96x32xf32>, vector<16x32xf32> -> vector<16x32xf32>
    %c2_82 = arith.constant 2 : index
    %c0_83 = arith.constant 0 : index
    %c0_84 = arith.constant 0 : index
    %81 = vector.load %arg6[%c2_82, %c0_83, %c0_84] : memref<3x1x32xf32, #tpu.memory_space<vmem>>, vector<1x1x32xf32>
    %82 = vector.shape_cast %81 : vector<1x1x32xf32> to vector<1x32xf32>
    %83 = vector.broadcast %82 : vector<1x32xf32> to vector<16x32xf32>
    %84 = arith.addf %80, %83 : vector<16x32xf32>
    %cst_85 = arith.constant 0.000000e+00 : f32
    %85 = vector.broadcast %cst_85 : f32 to vector<16x32xf32>
    %86 = arith.maximumf %84, %85 : vector<16x32xf32>
    %c2_86 = arith.constant 2 : index
    %c0_87 = arith.constant 0 : index
    %c0_88 = arith.constant 0 : index
    %87 = vector.load %arg7[%c2_86, %c0_87, %c0_88] : memref<3x32x32xf32, #tpu.memory_space<vmem>>, vector<1x32x32xf32>
    %88 = vector.shape_cast %87 : vector<1x32x32xf32> to vector<32x32xf32>
    %cst_89 = arith.constant dense<0.000000e+00> : vector<16x32xf32>
    %89 = tpu.matmul %86, %88, %cst_89 {dimension_numbers = #tpu.dot_dimension_numbers<[1], [0], [0], [1], [0, 0, 1, 1], [], []>} : vector<16x32xf32>, vector<32x32xf32>, vector<16x32xf32> -> vector<16x32xf32>
    %c2_90 = arith.constant 2 : index
    %c0_91 = arith.constant 0 : index
    %c0_92 = arith.constant 0 : index
    %90 = vector.load %arg8[%c2_90, %c0_91, %c0_92] : memref<3x1x32xf32, #tpu.memory_space<vmem>>, vector<1x1x32xf32>
    %91 = vector.shape_cast %90 : vector<1x1x32xf32> to vector<1x32xf32>
    %92 = vector.broadcast %91 : vector<1x32xf32> to vector<16x32xf32>
    %93 = arith.addf %89, %92 : vector<16x32xf32>
    %94 = arith.addf %71, %93 : vector<16x32xf32>
    %95 = vector.broadcast %6 : vector<16x1xf32> to vector<16x32xf32>
    %96 = arith.mulf %94, %95 : vector<16x32xf32>
    %c4_93 = arith.constant 4 : index
    %c0_94 = arith.constant 0 : index
    %97 = vector.load %arg12[%c4_93, %c0_94] : memref<24x32xf32, #tpu.memory_space<vmem>>, vector<16x32xf32>
    tpu.vector_store %arg12[%c4_93, %c0_94], %96 {strides = array<i32>} : memref<24x32xf32, #tpu.memory_space<vmem>>, vector<16x32xf32>,
    %c4_95 = arith.constant 4 : index
    %c0_96 = arith.constant 0 : index
    %98 = vector.load %arg12[%c4_95, %c0_96] : memref<24x32xf32, #tpu.memory_space<vmem>>, vector<16x32xf32>
    %c0_97 = arith.constant 0 : index
    %c0_98 = arith.constant 0 : index
    %99 = vector.load %arg9[%c0_97, %c0_98] : memref<32x6xf32, #tpu.memory_space<vmem>>, vector<32x6xf32>
    %cst_99 = arith.constant dense<0.000000e+00> : vector<16x6xf32>
    %100 = tpu.matmul %98, %99, %cst_99 {dimension_numbers = #tpu.dot_dimension_numbers<[1], [0], [0], [1], [0, 0, 1, 1], [], []>} : vector<16x32xf32>, vector<32x6xf32>, vector<16x6xf32> -> vector<16x6xf32>
    %c0_100 = arith.constant 0 : index
    %c0_101 = arith.constant 0 : index
    %101 = vector.load %arg10[%c0_100, %c0_101] : memref<1x6xf32, #tpu.memory_space<vmem>>, vector<1x6xf32>
    %102 = vector.broadcast %101 : vector<1x6xf32> to vector<16x6xf32>
    %103 = arith.addf %100, %102 : vector<16x6xf32>
    %104 = vector.broadcast %6 : vector<16x1xf32> to vector<16x6xf32>
    %105 = arith.mulf %103, %104 : vector<16x6xf32>
    %c0_102 = arith.constant 0 : index
    %c0_103 = arith.constant 0 : index
    %c0_104 = arith.constant 0 : index
    %106 = vector.load %arg11[%c0_102, %c0_103, %c0_104] : memref<1x16x6xf32, #tpu.memory_space<vmem>>, vector<1x16x6xf32>
    %107 = vector.shape_cast %106 : vector<1x16x6xf32> to vector<16x6xf32>
    %108 = vector.shape_cast %105 : vector<16x6xf32> to vector<1x16x6xf32>
    tpu.vector_store %arg11[%c0_102, %c0_103, %c0_104], %108 {strides = array<i32>} : memref<1x16x6xf32, #tpu.memory_space<vmem>>, vector<1x16x6xf32>,
    return
  }
  func.func @transform_0(%arg0: i32, %arg1: memref<2xi32, #tpu.memory_space<smem>>) -> (i32, i32, i32) {
    %c0_i32 = arith.constant 0 : i32
    %c0_i32_0 = arith.constant 0 : i32
    %c0_i32_1 = arith.constant 0 : i32
    return %arg0, %c0_i32, %c0_i32_0 : i32, i32, i32
  }
  func.func @transform_1(%arg0: i32, %arg1: memref<2xi32, #tpu.memory_space<smem>>) -> (i32, i32) {
    %c0_i32 = arith.constant 0 : i32
    %c0_i32_0 = arith.constant 0 : i32
    %c0_i32_1 = arith.constant 0 : i32
    return %c0_i32, %c0_i32_0 : i32, i32
  }
  func.func @transform_2(%arg0: i32, %arg1: memref<2xi32, #tpu.memory_space<smem>>) -> (i32, i32) {
    %c0_i32 = arith.constant 0 : i32
    %c0_i32_0 = arith.constant 0 : i32
    %c0_i32_1 = arith.constant 0 : i32
    return %c0_i32, %c0_i32_0 : i32, i32
  }
  func.func @transform_3(%arg0: i32, %arg1: memref<2xi32, #tpu.memory_space<smem>>) -> (i32, i32, i32) {
    %c0_i32 = arith.constant 0 : i32
    %c0_i32_0 = arith.constant 0 : i32
    %c0_i32_1 = arith.constant 0 : i32
    %c0_i32_2 = arith.constant 0 : i32
    return %c0_i32, %c0_i32_0, %c0_i32_1 : i32, i32, i32
  }
  func.func @transform_4(%arg0: i32, %arg1: memref<2xi32, #tpu.memory_space<smem>>) -> (i32, i32, i32) {
    %c0_i32 = arith.constant 0 : i32
    %c0_i32_0 = arith.constant 0 : i32
    %c0_i32_1 = arith.constant 0 : i32
    %c0_i32_2 = arith.constant 0 : i32
    return %c0_i32, %c0_i32_0, %c0_i32_1 : i32, i32, i32
  }
  func.func @transform_5(%arg0: i32, %arg1: memref<2xi32, #tpu.memory_space<smem>>) -> (i32, i32, i32) {
    %c0_i32 = arith.constant 0 : i32
    %c0_i32_0 = arith.constant 0 : i32
    %c0_i32_1 = arith.constant 0 : i32
    %c0_i32_2 = arith.constant 0 : i32
    return %c0_i32, %c0_i32_0, %c0_i32_1 : i32, i32, i32
  }
  func.func @transform_6(%arg0: i32, %arg1: memref<2xi32, #tpu.memory_space<smem>>) -> (i32, i32, i32) {
    %c0_i32 = arith.constant 0 : i32
    %c0_i32_0 = arith.constant 0 : i32
    %c0_i32_1 = arith.constant 0 : i32
    %c0_i32_2 = arith.constant 0 : i32
    return %c0_i32, %c0_i32_0, %c0_i32_1 : i32, i32, i32
  }
  func.func @transform_7(%arg0: i32, %arg1: memref<2xi32, #tpu.memory_space<smem>>) -> (i32, i32) {
    %c0_i32 = arith.constant 0 : i32
    %c0_i32_0 = arith.constant 0 : i32
    %c0_i32_1 = arith.constant 0 : i32
    return %c0_i32, %c0_i32_0 : i32, i32
  }
  func.func @transform_8(%arg0: i32, %arg1: memref<2xi32, #tpu.memory_space<smem>>) -> (i32, i32) {
    %c0_i32 = arith.constant 0 : i32
    %c0_i32_0 = arith.constant 0 : i32
    %c0_i32_1 = arith.constant 0 : i32
    return %c0_i32, %c0_i32_0 : i32, i32
  }
  func.func @transform_9(%arg0: i32, %arg1: memref<2xi32, #tpu.memory_space<smem>>) -> (i32, i32, i32) {
    %c0_i32 = arith.constant 0 : i32
    %c0_i32_0 = arith.constant 0 : i32
    %c0_i32_1 = arith.constant 0 : i32
    return %arg0, %c0_i32, %c0_i32_0 : i32, i32, i32
  }
}

</mosaic_0001>

<llo_original>
// kernel: tpu_custom_call.1
$region0: #{tpu_custom_call.1}
  #allocation0 [shape = 'u32[]', space=smem, size = 0x4, offset = 0x4, fixed_abs, tag = 'smem constant byte address 0x4 - core index']
  #allocation1 [shape = 'u32[144,128]{1,0:T(1,128)}', space=vmem, size = 0x12000, scoped, tag = 'internal scratch']
  #allocation2 [shape = 'f32[24,32]{1,0:T(8,128)}', space=vmem, size = 0x3000, scoped, tag = 'scratch operand']
  #allocation3 [shape = 'f32[16,96]{1,0:T(8,128)}', space=vmem, size = 0x2000, scoped, tag = 'scratch operand']
  #allocation4 [shape = 's32[1]{0}', space=sflag, size = 0x4, scoped, tag = 'scoped memory for tpu_custom_call.1']
  #allocation5 [shape = 'u8[512]{0}', space=smem, size = 0x200, scoped, tag = 'prefetched SMEM operand 0']
  %s0 = inlined_call_operand.vmem [shape: s32[2], index: 0, kind: input, shape index: {}]
  %s1 = inlined_call_operand.vmem [shape: f32[2,16,8], index: 1, kind: input, shape index: {}]
  %s2 = inlined_call_operand.vmem [shape: f32[8,32], index: 2, kind: input, shape index: {}]
  %s3 = inlined_call_operand.vmem [shape: f32[1,32], index: 3, kind: input, shape index: {}]
  %s4 = inlined_call_operand.vmem [shape: f32[3,96,32], index: 4, kind: input, shape index: {}]
  %s5 = inlined_call_operand.vmem [shape: f32[3,1,32], index: 5, kind: input, shape index: {}]
  %s6 = inlined_call_operand.vmem [shape: f32[3,32,32], index: 6, kind: input, shape index: {}]
  %s7 = inlined_call_operand.vmem [shape: f32[3,1,32], index: 7, kind: input, shape index: {}]
  %s8 = inlined_call_operand.vmem [shape: f32[32,6], index: 8, kind: input, shape index: {}]
  %s9 = inlined_call_operand.vmem [shape: f32[1,6], index: 9, kind: input, shape index: {}]
  %s10 = inlined_call_operand.vmem [shape: f32[2,16,6], index: 10, kind: output, shape index: {}]
  %s11 = sld [smem:[#allocation0]]
  $region69: #{tpu_custom_call.1} parent=0
    _
  %s13 = ssub.s32 1, %s11
  %s14 = scalar_select 0, %s13, %s11
  %s15 = sshll.u32 %s0, 4
  %s16 = int_to_ptr.vmem [resolvable:$true] %s15
  %18 = dma.vmem_to_smem %s16, 16, [#allocation5], [#allocation4]
  %19 = dma.done [#allocation4], 16
  %20 = sfence
  loop: start=0, step=1, limit=4
  $region2: #{tpu_custom_call.1} parent=0 // loop_pre_header
    _
  $region3: #{tpu_custom_call.1} parent=0 // loop_header
    %s22 = sphi 0, %s26
    %p23 = scmp.ge.s32.totalorder %s22, 4
    %s32 = sphi 0, %s34
    %s35 = sphi 0, %s32
    %s36 = sphi 0, %s35
    %s52 = sphi 0, %s36
    %s56 = sphi 0, %s56
    %s58 = sphi 0, %s56
    %s59 = sphi 0, %s58
    %s73 = sphi 0, %s59
    %s77 = sphi 0, %s77
    %s79 = sphi 0, %s77
    %s80 = sphi 0, %s79
    %s94 = sphi 0, %s80
    %s98 = sphi 0, %s98
    %s100 = sphi 0, %s98
    %s101 = sphi 0, %s100
    %s115 = sphi 0, %s101
    %s119 = sphi 0, %s119
    %s121 = sphi 0, %s119
    %s122 = sphi 0, %s121
    %s136 = sphi 0, %s122
    %s140 = sphi 0, %s140
    %s142 = sphi 0, %s140
    %s143 = sphi 0, %s142
    %s157 = sphi 0, %s143
    %s161 = sphi 0, %s161
    %s163 = sphi 0, %s161
    %s164 = sphi 0, %s163
    %s178 = sphi 0, %s164
    %s182 = sphi 0, %s182
    %s184 = sphi 0, %s182
    %s185 = sphi 0, %s184
    %s199 = sphi 0, %s185
    %s203 = sphi 0, %s203
    %s205 = sphi 0, %s203
    %s206 = sphi 0, %s205
    %s220 = sphi 0, %s206
    %s226 = sphi 0, %s228
    %s229 = sphi 0, %s226
    %s230 = sphi 0, %s229
    %s246 = sphi 0, %s230
  $region4: #{tpu_custom_call.1} parent=0 // loop_header_branch
    %25 = sbr.rel (%p23) target = $region8
  $region5: #{tpu_custom_call.1} parent=0 // loop_body
    %s27 = ssub.s32 %s22, 1
    %s28 = ssub.s32 %s22, 2
    %s29 = sadd.s32 %s22, 1
    %s30 = ssub.s32 %s22, %s29
    %p31 = scmp.eq.s32.totalorder %s30, 0
    %s33 = sadd.s32 %s32, 1
    %s34 = scalar_select %p31, %s32, %s33
    %p37 = pneg %p31
    %p38 = scmp.eq.s32.totalorder %s22, 1
    %p39 = por %p37, %p38
    %p40 = scmp.ne.s32.totalorder %s32, %s35
    %p41 = scmp.eq.s32.totalorder %s22, 0
    %p42 = por %p40, %p41
    %p43 = scmp.ne.s32.totalorder %s32, %s35
    %p44 = scmp.eq.s32.totalorder %s27, 1
    %p45 = por %p43, %p44
    %p46 = scmp.ne.s32.totalorder %s35, %s36
    %p47 = scmp.eq.s32.totalorder %s27, 0
    %p48 = por %p46, %p47
    %p49 = scmp.ne.s32.totalorder %s35, %s36
    %p50 = scmp.eq.s32.totalorder %s28, 1
    %p51 = por %p49, %p50
    %p53 = scmp.ne.s32.totalorder %s36, %s52
    %p54 = scmp.eq.s32.totalorder %s28, 0
    %p55 = por %p53, %p54
    %s57 = sadd.s32 %s56, 1
    %p60 = scmp.eq.s32.totalorder %s22, 1
    %p61 = scmp.ne.s32.totalorder %s56, %s58
    %p62 = scmp.eq.s32.totalorder %s22, 0
    %p63 = por %p61, %p62
    %p64 = scmp.ne.s32.totalorder %s56, %s58
    %p65 = scmp.eq.s32.totalorder %s27, 1
    %p66 = por %p64, %p65
    %p67 = scmp.ne.s32.totalorder %s58, %s59
    %p68 = scmp.eq.s32.totalorder %s27, 0
    %p69 = por %p67, %p68
    %p70 = scmp.ne.s32.totalorder %s58, %s59
    %p71 = scmp.eq.s32.totalorder %s28, 1
    %p72 = por %p70, %p71
    %p74 = scmp.ne.s32.totalorder %s59, %s73
    %p75 = scmp.eq.s32.totalorder %s28, 0
    %p76 = por %p74, %p75
    %s78 = sadd.s32 %s77, 1
    %p81 = scmp.eq.s32.totalorder %s22, 1
    %p82 = scmp.ne.s32.totalorder %s77, %s79
    %p83 = scmp.eq.s32.totalorder %s22, 0
    %p84 = por %p82, %p83
    %p85 = scmp.ne.s32.totalorder %s77, %s79
    %p86 = scmp.eq.s32.totalorder %s27, 1
    %p87 = por %p85, %p86
    %p88 = scmp.ne.s32.totalorder %s79, %s80
    %p89 = scmp.eq.s32.totalorder %s27, 0
    %p90 = por %p88, %p89
    %p91 = scmp.ne.s32.totalorder %s79, %s80
    %p92 = scmp.eq.s32.totalorder %s28, 1
    %p93 = por %p91, %p92
    %p95 = scmp.ne.s32.totalorder %s80, %s94
    %p96 = scmp.eq.s32.totalorder %s28, 0
    %p97 = por %p95, %p96
    %s99 = sadd.s32 %s98, 1
    %p102 = scmp.eq.s32.totalorder %s22, 1
    %p103 = scmp.ne.s32.totalorder %s98, %s100
    %p104 = scmp.eq.s32.totalorder %s22, 0
    %p105 = por %p103, %p104
    %p106 = scmp.ne.s32.totalorder %s98, %s100
    %p107 = scmp.eq.s32.totalorder %s27, 1
    %p108 = por %p106, %p107
    %p109 = scmp.ne.s32.totalorder %s100, %s101
    %p110 = scmp.eq.s32.totalorder %s27, 0
    %p111 = por %p109, %p110
    %p112 = scmp.ne.s32.totalorder %s100, %s101
    %p113 = scmp.eq.s32.totalorder %s28, 1
    %p114 = por %p112, %p113
    %p116 = scmp.ne.s32.totalorder %s101, %s115
    %p117 = scmp.eq.s32.totalorder %s28, 0
    %p118 = por %p116, %p117
    %s120 = sadd.s32 %s119, 1
    %p123 = scmp.eq.s32.totalorder %s22, 1
    %p124 = scmp.ne.s32.totalorder %s119, %s121
    %p125 = scmp.eq.s32.totalorder %s22, 0
    %p126 = por %p124, %p125
    %p127 = scmp.ne.s32.totalorder %s119, %s121
    %p128 = scmp.eq.s32.totalorder %s27, 1
    %p129 = por %p127, %p128
    %p130 = scmp.ne.s32.totalorder %s121, %s122
    %p131 = scmp.eq.s32.totalorder %s27, 0
    %p132 = por %p130, %p131
    %p133 = scmp.ne.s32.totalorder %s121, %s122
    %p134 = scmp.eq.s32.totalorder %s28, 1
    %p135 = por %p133, %p134
    %p137 = scmp.ne.s32.totalorder %s122, %s136
    %p138 = scmp.eq.s32.totalorder %s28, 0
    %p139 = por %p137, %p138
    %s141 = sadd.s32 %s140, 1
    %p144 = scmp.eq.s32.totalorder %s22, 1
    %p145 = scmp.ne.s32.totalorder %s140, %s142
    %p146 = scmp.eq.s32.totalorder %s22, 0
    %p147 = por %p145, %p146
    %p148 = scmp.ne.s32.totalorder %s140, %s142
    %p149 = scmp.eq.s32.totalorder %s27, 1
    %p150 = por %p148, %p149
    %p151 = scmp.ne.s32.totalorder %s142, %s143
    %p152 = scmp.eq.s32.totalorder %s27, 0
    %p153 = por %p151, %p152
    %p154 = scmp.ne.s32.totalorder %s142, %s143
    %p155 = scmp.eq.s32.totalorder %s28, 1
    %p156 = por %p154, %p155
    %p158 = scmp.ne.s32.totalorder %s143, %s157
    %p159 = scmp.eq.s32.totalorder %s28, 0
    %p160 = por %p158, %p159
    %s162 = sadd.s32 %s161, 1
    %p165 = scmp.eq.s32.totalorder %s22, 1
    %p166 = scmp.ne.s32.totalorder %s161, %s163
    %p167 = scmp.eq.s32.totalorder %s22, 0
    %p168 = por %p166, %p167
    %p169 = scmp.ne.s32.totalorder %s161, %s163
    %p170 = scmp.eq.s32.totalorder %s27, 1
    %p171 = por %p169, %p170
    %p172 = scmp.ne.s32.totalorder %s163, %s164
    %p173 = scmp.eq.s32.totalorder %s27, 0
    %p174 = por %p172, %p173
    %p175 = scmp.ne.s32.totalorder %s163, %s164
    %p176 = scmp.eq.s32.totalorder %s28, 1
    %p177 = por %p175, %p176
    %p179 = scmp.ne.s32.totalorder %s164, %s178
    %p180 = scmp.eq.s32.totalorder %s28, 0
    %p181 = por %p179, %p180
    %s183 = sadd.s32 %s182, 1
    %p186 = scmp.eq.s32.totalorder %s22, 1
    %p187 = scmp.ne.s32.totalorder %s182, %s184
    %p188 = scmp.eq.s32.totalorder %s22, 0
    %p189 = por %p187, %p188
    %p190 = scmp.ne.s32.totalorder %s182, %s184
    %p191 = scmp.eq.s32.totalorder %s27, 1
    %p192 = por %p190, %p191
    %p193 = scmp.ne.s32.totalorder %s184, %s185
    %p194 = scmp.eq.s32.totalorder %s27, 0
    %p195 = por %p193, %p194
    %p196 = scmp.ne.s32.totalorder %s184, %s185
    %p197 = scmp.eq.s32.totalorder %s28, 1
    %p198 = por %p196, %p197
    %p200 = scmp.ne.s32.totalorder %s185, %s199
    %p201 = scmp.eq.s32.totalorder %s28, 0
    %p202 = por %p200, %p201
    %s204 = sadd.s32 %s203, 1
    %p207 = scmp.eq.s32.totalorder %s22, 1
    %p208 = scmp.ne.s32.totalorder %s203, %s205
    %p209 = scmp.eq.s32.totalorder %s22, 0
    %p210 = por %p208, %p209
    %p211 = scmp.ne.s32.totalorder %s203, %s205
    %p212 = scmp.eq.s32.totalorder %s27, 1
    %p213 = por %p211, %p212
    %p214 = scmp.ne.s32.totalorder %s205, %s206
    %p215 = scmp.eq.s32.totalorder %s27, 0
    %p216 = por %p214, %p215
    %p217 = scmp.ne.s32.totalorder %s205, %s206
    %p218 = scmp.eq.s32.totalorder %s28, 1
    %p219 = por %p217, %p218
    %p221 = scmp.ne.s32.totalorder %s206, %s220
    %p222 = scmp.eq.s32.totalorder %s28, 0
    %p223 = por %p221, %p222
    %s224 = ssub.s32 %s22, %s29
    %p225 = scmp.eq.s32.totalorder %s224, 0
    %s227 = sadd.s32 %s226, 1
    %s228 = scalar_select %p225, %s226, %s227
    %p231 = pneg %p225
    %p232 = scmp.eq.s32.totalorder %s22, 1
    %p233 = por %p231, %p232
    %p234 = scmp.ne.s32.totalorder %s226, %s229
    %p235 = scmp.eq.s32.totalorder %s22, 0
    %p236 = por %p234, %p235
    %p237 = scmp.ne.s32.totalorder %s226, %s229
    %p238 = scmp.eq.s32.totalorder %s27, 1
    %p239 = por %p237, %p238
    %p240 = scmp.ne.s32.totalorder %s229, %s230
    %p241 = scmp.eq.s32.totalorder %s27, 0
    %p242 = por %p240, %p241
    %p243 = scmp.ne.s32.totalorder %s229, %s230
    %p244 = scmp.eq.s32.totalorder %s28, 1
    %p245 = por %p243, %p244
    %p247 = scmp.ne.s32.totalorder %s230, %s246
    %p248 = scmp.eq.s32.totalorder %s28, 0
    %p249 = por %p247, %p248
    %p250 = scmp.le.s32.totalorder 1, %s22
    %p251 = scmp.lt.s32.totalorder %s22, 3
    %p252 = pnand %p250, %p251
    %p253 = pneg %p252
    // Predicated region
    $region9: #{tpu_custom_call.1} parent=5 // pred_check
      _
    $region10: #{tpu_custom_call.1} parent=5 // pred_check_branch
      %255 = sbr.rel (%p252) target = $region12
    $region11: #{tpu_custom_call.1} parent=5 // pred_region
      %s256 = ssub.s32 %s22, 1
      // Predicated region
      $region13: #{tpu_custom_call.1} parent=11 // pred_check
        %p257 = pneg %p69
      $region14: #{tpu_custom_call.1} parent=11 // pred_check_branch
        %259 = sbr.rel (%p257) target = $region16
      $region15: #{tpu_custom_call.1} parent=11 // pred_region
        _
      $region16: #{tpu_custom_call.1} parent=11 // pred_fallthru
        _
      // Predicated region
      $region17: #{tpu_custom_call.1} parent=11 // pred_check
        %p260 = pneg %p90
      $region18: #{tpu_custom_call.1} parent=11 // pred_check_branch
        %262 = sbr.rel (%p260) target = $region20
      $region19: #{tpu_custom_call.1} parent=11 // pred_region
        _
      $region20: #{tpu_custom_call.1} parent=11 // pred_fallthru
        _
      // Predicated region
      $region21: #{tpu_custom_call.1} parent=11 // pred_check
        %p263 = pneg %p111
      $region22: #{tpu_custom_call.1} parent=11 // pred_check_branch
        %265 = sbr.rel (%p263) target = $region24
      $region23: #{tpu_custom_call.1} parent=11 // pred_region
        _
      $region24: #{tpu_custom_call.1} parent=11 // pred_fallthru
        _
      // Predicated region
      $region25: #{tpu_custom_call.1} parent=11 // pred_check
        %p266 = pneg %p132
      $region26: #{tpu_custom_call.1} parent=11 // pred_check_branch
        %268 = sbr.rel (%p266) target = $region28
      $region27: #{tpu_custom_call.1} parent=11 // pred_region
        _
      $region28: #{tpu_custom_call.1} parent=11 // pred_fallthru
        _
      // Predicated region
      $region29: #{tpu_custom_call.1} parent=11 // pred_check
        %p269 = pneg %p153
      $region30: #{tpu_custom_call.1} parent=11 // pred_check_branch
        %271 = sbr.rel (%p269) target = $region32
      $region31: #{tpu_custom_call.1} parent=11 // pred_region
        _
      $region32: #{tpu_custom_call.1} parent=11 // pred_fallthru
        _
      // Predicated region
      $region33: #{tpu_custom_call.1} parent=11 // pred_check
        %p272 = pneg %p174
      $region34: #{tpu_custom_call.1} parent=11 // pred_check_branch
        %274 = sbr.rel (%p272) target = $region36
      $region35: #{tpu_custom_call.1} parent=11 // pred_region
        _
      $region36: #{tpu_custom_call.1} parent=11 // pred_fallthru
        _
      // Predicated region
      $region37: #{tpu_custom_call.1} parent=11 // pred_check
        %p275 = pneg %p195
      $region38: #{tpu_custom_call.1} parent=11 // pred_check_branch
        %277 = sbr.rel (%p275) target = $region40
      $region39: #{tpu_custom_call.1} parent=11 // pred_region
        _
      $region40: #{tpu_custom_call.1} parent=11 // pred_fallthru
        _
      // Predicated region
      $region41: #{tpu_custom_call.1} parent=11 // pred_check
        %p278 = pneg %p216
      $region42: #{tpu_custom_call.1} parent=11 // pred_check_branch
        %280 = sbr.rel (%p278) target = $region44
      $region43: #{tpu_custom_call.1} parent=11 // pred_region
        _
      $region44: #{tpu_custom_call.1} parent=11 // pred_fallthru
        _
    $region12: #{tpu_custom_call.1} parent=5 // pred_fallthru
      _
    %p281 = scmp.lt.s32.totalorder %s22, 2
    // Predicated region
    $region45: #{tpu_custom_call.1} parent=5 // pred_check
      %p282 = pneg %p281
    $region46: #{tpu_custom_call.1} parent=5 // pred_check_branch
      %284 = sbr.rel (%p282) target = $region48
    $region47: #{tpu_custom_call.1} parent=5 // pred_region
      // Predicated region
      $region49: #{tpu_custom_call.1} parent=47 // pred_check
        %p285 = pneg %p42
      $region50: #{tpu_custom_call.1} parent=47 // pred_check_branch
        %287 = sbr.rel (%p285) target = $region52
      $region51: #{tpu_custom_call.1} parent=47 // pred_region
        %p288 = scmp.lt.s32.totalorder %s22, 1
        %s289 = scalar_select %p288, %s22, 1
        %s290 = smul.addr %s289, 2
        %s291 = smul.addr %s290, 8
        %s292 = scalar_lea.vmem %s1, %s291
      $region52: #{tpu_custom_call.1} parent=47 // pred_fallthru
        _
    $region48: #{tpu_custom_call.1} parent=5 // pred_fallthru
      _
    %p293 = scmp.le.s32.totalorder 1, %s22
    %p294 = scmp.lt.s32.totalorder %s22, 3
    %p295 = pnand %p293, %p294
    %p296 = pneg %p295
    // Predicated region
    $region53: #{tpu_custom_call.1} parent=5 // pred_check
      _
    $region54: #{tpu_custom_call.1} parent=5 // pred_check_branch
      %298 = sbr.rel (%p295) target = $region56
    $region55: #{tpu_custom_call.1} parent=5 // pred_region
      %s299 = ssub.s32 %s22, 1
      %p300 = scmp.lt.s32.totalorder %s27, 1
      %s301 = scalar_select %p300, %s27, 1
      %s302 = smul.addr %s301, 2
      %s303 = smul.addr %s302, 8
      %s304 = scalar_lea.vmem %s1, %s303
      %p305 = pneg %p48
      %p306 = pneg %p45
      %p307 = pneg %p69
      %p308 = pneg %p66
      %p309 = pneg %p90
      %p310 = pneg %p87
      %p311 = pneg %p111
      %p312 = pneg %p108
      %p313 = pneg %p132
      %p314 = pneg %p129
      %p315 = pneg %p153
      %p316 = pneg %p150
      %p317 = pneg %p174
      %p318 = pneg %p171
      %p319 = pneg %p195
      %p320 = pneg %p192
      %p321 = pneg %p216
      %p322 = pneg %p213
      %p323 = pneg %p242
      %p324 = pneg %p239
      %p325 = scmp.lt.s32.totalorder %s27, 1
      %s326 = scalar_select %p325, %s27, 1
      %s327 = smul.addr %s326, 2
      %s328 = smul.addr %s327, 8
      %s329 = scalar_lea.vmem %s10, %s328
      %p330 = scmp.lt.s32.totalorder %s27, 1
      %s331 = scalar_select %p330, %s27, 1
      %s332 = smul.addr %s331, 2
      %s333 = smul.addr %s332, 8
      %s334 = scalar_lea.vmem %s1, %s333
      %p335 = scmp.lt.s32.totalorder %s27, 1
      %s336 = scalar_select %p335, %s27, 1
      %s337 = smul.addr %s336, 2
      %s338 = smul.addr %s337, 8
      %s339 = scalar_lea.vmem %s10, %s338
      %s340 = sld [smem:[#allocation5 + %s27]]
      %v341 = vlaneseq
      %v342 = vshrl.u32 %v341, 7
      %v343 = vadd.s32 %v342, 8
      %v344 = vstv %s340
      %vm345 = vcmp.lt.s32.totalorder %v342, %v344
      %vm346 = vcmp.lt.s32.totalorder %v343, %v344
      %v347 = vsel %vm345, 1, 0
      %v348 = vsel %vm346, 1, 0
      %v349 = vcvt.s32.f32 %v347
      %v350 = vcvt.s32.f32 %v348
      %v351 = vld [vmem:[%s334] sm:$0xff]
      %v352 = vld [vmem:[%s334 + $0x8] sm:$0xff]
      %v353 = vld [vmem:[%s2] sm:$0xff]
      %v354 = vld [vmem:[%s3] sm:$0x1]
      %v356 = vlaneseq
      %v357 = vshrl.u32 %v356, 7
      %v358 = vsub.s32 0, %v357
      %v359 = vrot.slane %v354, %v358
      %vm361 = vcmask 64512
      %v363 = vsel %vm361, %v351, 0
      %v366 = vsel %vm361, %v352, 0
      %368 = vmatprep.subr.mxu0 0.0
      %369 = vmatpush1.msra.mxu0 %v353
      %370 = vmatprep.subr.mxu0 0.0
      %371 = vmatpush1.msra.mxu0 0.0
      %372 = vmatprep.subr.mxu0 0.0
      %373 = vmatpush1.msra.mxu0 0.0
      %374 = vmatprep.subr.mxu0 0.0
      %375 = vmatpush1.msra.mxu0 0.0
      %376 = vmatprep.subr.mxu0 0.0
      %377 = vmatpush1.msra.mxu0 0.0
      %378 = vmatprep.subr.mxu0 0.0
      %379 = vmatpush1.msra.mxu0 0.0
      %380 = vmatprep.subr.mxu0 0.0
      %381 = vmatpush1.msra.mxu0 0.0
      %382 = vmatprep.subr.mxu0 0.0
      %383 = vmatpush1.msra.mxu0 0.0
      %384 = vmatprep.subr.mxu0 0.0
      %385 = vmatpush1.msra.mxu0 0.0
      %386 = vmatprep.subr.mxu0 0.0
      %387 = vmatpush1.msra.mxu0 0.0
      %388 = vmatprep.subr.mxu0 0.0
      %389 = vmatpush1.msra.mxu0 0.0
      %390 = vmatprep.subr.mxu0 0.0
      %391 = vmatpush1.msra.mxu0 0.0
      %392 = vmatprep.subr.mxu0 0.0
      %393 = vmatpush1.msra.mxu0 0.0
      %394 = vmatprep.subr.mxu0 0.0
      %395 = vmatpush1.msra.mxu0 0.0
      %396 = vmatprep.subr.mxu0 0.0
      %397 = vmatpush1.msra.mxu0 0.0
      %398 = vmatprep.subr.mxu0 0.0
      %399 = vmatpush1.msra.mxu0 0.0
      %400 = vmatprep.subr.mxu0 0.0
      %401 = vmatpush1.msra.mxu0 0.0
      %402 = vmatprep.subr.mxu0 0.0
      %403 = vmatpush1.msra.mxu0 0.0
      %404 = vmatprep.subr.mxu0 0.0
      %405 = vmatpush1.msra.mxu0 0.0
      %406 = vmatprep.subr.mxu0 0.0
      %407 = vmatpush1.msra.mxu0 0.0
      %408 = vmatprep.subr.mxu0 0.0
      %409 = vmatpush1.msra.mxu0 0.0
      %410 = vmatprep.subr.mxu0 0.0
      %411 = vmatpush1.msra.mxu0 0.0
      %412 = vmatprep.subr.mxu0 0.0
      %413 = vmatpush1.msra.mxu0 0.0
      %414 = vmatprep.subr.mxu0 0.0
      %415 = vmatpush1.msra.mxu0 0.0
      %416 = vmatprep.subr.mxu0 0.0
      %417 = vmatpush1.msra.mxu0 0.0
      %418 = vmatprep.subr.mxu0 0.0
      %419 = vmatpush1.msra.mxu0 0.0
      %420 = vmatprep.subr.mxu0 0.0
      %421 = vmatpush1.msra.mxu0 0.0
      %422 = vmatprep.subr.mxu0 0.0
      %423 = vmatpush1.msra.mxu0 0.0
      %424 = vmatprep.subr.mxu0 0.0
      %425 = vmatpush1.msra.mxu0 0.0
      %426 = vmatprep.subr.mxu0 0.0
      %427 = vmatpush1.msra.mxu0 0.0
      %428 = vmatprep.subr.mxu0 0.0
      %429 = vmatpush1.msra.mxu0 0.0
      %430 = vmatprep.subr.mxu0 0.0
      %431 = vmatpush1.msra.mxu0 0.0
      %432 = vmatprep.mubr.f32.mxu0 0.0
      %433 = vmatmul.mubr.f32.gmra.mrb[0].mxu0 %v363
      %v434 = vpop.f32.mrb[0].mxu0
      %v435 = vadd.f32 %v359, %v434
      %v436 = vpop.f32.mrb[0].mxu0
      %437 = vmatprep.mubr.f32.mxu0 0.0
      %438 = vmatmul.mubr.f32.gmra.mrb[0].mxu0 %v366
      %v439 = vpop.f32.mrb[0].mxu0
      %v440 = vadd.f32 %v359, %v439
      %v441 = vpop.f32.mrb[0].mxu0
      %442 = vdwg.mxu0
      %vm443 = vcmask 261120
      %444 = vst.msk [vmem:[#allocation2] sm:$0xff] %vm443, 0.0
      %445 = vst.msk [vmem:[#allocation2 + $0x8] sm:$0xff] %vm443, 0.0
      %446 = vst.msk [vmem:[#allocation2 + $0x10] sm:$0xff] %vm443, 0.0
      %447 = vst.msk [vmem:[#allocation2 + $0x4] sm:$0xff] %vm443, %v435
      %448 = vst.msk [vmem:[#allocation2 + $0xc] sm:$0xff] %vm443, %v440
      %v449 = vld [vmem:[#allocation2 + $0x4] sm:$0xff]
      %v450 = vld [vmem:[#allocation2 + $0xc] sm:$0xff]
      %v451 = vld [vmem:[#allocation2 + $0x3] sm:$0xff]
      %v452 = vld [vmem:[#allocation2 + $0xb] sm:$0xff]
      %453 = vst.msk [vmem:[#allocation3] sm:$0xff] %vm443, %v451
      %454 = vst.msk [vmem:[#allocation3 + $0x8] sm:$0xff] %vm443, %v452
      %457 = vrot.lane.b32.xlu0 %v449, 32
      %v458 = vpop.permute.xlu0 %457
      %459 = vrot.lane.b32.xlu0 %v450, 32
      %v460 = vpop.permute.xlu0 %459
      %vm463 = vcmask 523520
      %464 = vst.msk [vmem:[#allocation3] sm:$0xff] %vm463, %v458
      %465 = vst.msk [vmem:[#allocation3 + $0x8] sm:$0xff] %vm463, %v460
      %v466 = vld [vmem:[#allocation2 + $0x5] sm:$0xff]
      %v467 = vld [vmem:[#allocation2 + $0xd] sm:$0xff]
      %470 = vrot.lane.b32.xlu0 %v466, 64
      %v471 = vpop.permute.xlu0 %470
      %472 = vrot.lane.b32.xlu0 %v467, 64
      %v473 = vpop.permute.xlu0 %472
      %vm476 = vcmask 785920
      %477 = vst.msk [vmem:[#allocation3] sm:$0xff] %vm476, %v471
      %478 = vst.msk [vmem:[#allocation3 + $0x8] sm:$0xff] %vm476, %v473
      %v479 = vld [vmem:[#allocation3] sm:$0xff]
      %v480 = vld [vmem:[#allocation3 + $0x8] sm:$0xff]
      %v481 = vld [vmem:[%s4] sm:$0xff]
      %v482 = vld [vmem:[%s4 + $0x8] sm:$0xff]
      %v483 = vld [vmem:[%s4 + $0x10] sm:$0xff]
      %v484 = vld [vmem:[%s4 + $0x18] sm:$0xff]
      %v485 = vld [vmem:[%s4 + $0x20] sm:$0xff]
      %v486 = vld [vmem:[%s4 + $0x28] sm:$0xff]
      %v487 = vld [vmem:[%s4 + $0x30] sm:$0xff]
      %v488 = vld [vmem:[%s4 + $0x38] sm:$0xff]
      %v489 = vld [vmem:[%s4 + $0x40] sm:$0xff]
      %v490 = vld [vmem:[%s4 + $0x48] sm:$0xff]
      %v491 = vld [vmem:[%s4 + $0x50] sm:$0xff]
      %v492 = vld [vmem:[%s4 + $0x58] sm:$0xff]
      %v493 = vld [vmem:[%s5] sm:$0x1]
      %v495 = vlaneseq
      %v496 = vshrl.u32 %v495, 7
      %v497 = vsub.s32 0, %v496
      %v498 = vrot.slane %v493, %v497
      %vm500 = vcmask 785408
      %v502 = vsel %vm500, %v479, 0
      %v505 = vsel %vm500, %v480, 0
      %507 = vmatprep.subr.mxu0 0.0
      %508 = vmatpush1.msra.mxu0 %v481
      %509 = vmatprep.subr.mxu0 0.0
      %510 = vmatpush1.msra.mxu0 %v482
      %511 = vmatprep.subr.mxu0 0.0
      %512 = vmatpush1.msra.mxu0 %v483
      %513 = vmatprep.subr.mxu0 0.0
      %514 = vmatpush1.msra.mxu0 %v484
      %515 = vmatprep.subr.mxu0 0.0
      %516 = vmatpush1.msra.mxu0 %v485
      %517 = vmatprep.subr.mxu0 0.0
      %518 = vmatpush1.msra.mxu0 %v486
      %519 = vmatprep.subr.mxu0 0.0
      %520 = vmatpush1.msra.mxu0 %v487
      %521 = vmatprep.subr.mxu0 0.0
      %522 = vmatpush1.msra.mxu0 %v488
      %523 = vmatprep.subr.mxu0 0.0
      %524 = vmatpush1.msra.mxu0 %v489
      %525 = vmatprep.subr.mxu0 0.0
      %526 = vmatpush1.msra.mxu0 %v490
      %527 = vmatprep.subr.mxu0 0.0
      %528 = vmatpush1.msra.mxu0 %v491
      %529 = vmatprep.subr.mxu0 0.0
      %530 = vmatpush1.msra.mxu0 %v492
      %531 = vmatprep.subr.mxu0 0.0
      %532 = vmatpush1.msra.mxu0 0.0
      %533 = vmatprep.subr.mxu0 0.0
      %534 = vmatpush1.msra.mxu0 0.0
      %535 = vmatprep.subr.mxu0 0.0
      %536 = vmatpush1.msra.mxu0 0.0
      %537 = vmatprep.subr.mxu0 0.0
      %538 = vmatpush1.msra.mxu0 0.0
      %539 = vmatprep.subr.mxu0 0.0
      %540 = vmatpush1.msra.mxu0 0.0
      %541 = vmatprep.subr.mxu0 0.0
      %542 = vmatpush1.msra.mxu0 0.0
      %543 = vmatprep.subr.mxu0 0.0
      %544 = vmatpush1.msra.mxu0 0.0
      %545 = vmatprep.subr.mxu0 0.0
      %546 = vmatpush1.msra.mxu0 0.0
      %547 = vmatprep.subr.mxu0 0.0
      %548 = vmatpush1.msra.mxu0 0.0
      %549 = vmatprep.subr.mxu0 0.0
      %550 = vmatpush1.msra.mxu0 0.0
      %551 = vmatprep.subr.mxu0 0.0
      %552 = vmatpush1.msra.mxu0 0.0
      %553 = vmatprep.subr.mxu0 0.0
      %554 = vmatpush1.msra.mxu0 0.0
      %555 = vmatprep.subr.mxu0 0.0
      %556 = vmatpush1.msra.mxu0 0.0
      %557 = vmatprep.subr.mxu0 0.0
      %558 = vmatpush1.msra.mxu0 0.0
      %559 = vmatprep.subr.mxu0 0.0
      %560 = vmatpush1.msra.mxu0 0.0
      %561 = vmatprep.subr.mxu0 0.0
      %562 = vmatpush1.msra.mxu0 0.0
      %563 = vmatprep.subr.mxu0 0.0
      %564 = vmatpush1.msra.mxu0 0.0
      %565 = vmatprep.subr.mxu0 0.0
      %566 = vmatpush1.msra.mxu0 0.0
      %567 = vmatprep.subr.mxu0 0.0
      %568 = vmatpush1.msra.mxu0 0.0
      %569 = vmatprep.subr.mxu0 0.0
      %570 = vmatpush1.msra.mxu0 0.0
      %571 = vmatprep.mubr.f32.mxu0 0.0
      %572 = vmatmul.mubr.f32.gmra.mrb[0].mxu0 %v502
      %v573 = vpop.f32.mrb[0].mxu0
      %v574 = vadd.f32 %v498, %v573
      %v575 = vpop.f32.mrb[0].mxu0
      %576 = vmatprep.mubr.f32.mxu0 0.0
      %577 = vmatmul.mubr.f32.gmra.mrb[0].mxu0 %v505
      %v578 = vpop.f32.mrb[0].mxu0
      %v579 = vadd.f32 %v498, %v578
      %v580 = vpop.f32.mrb[0].mxu0
      %581 = vdwg.mxu0
      %v582 = vmax.f32 %v574, 0.0
      %v583 = vmax.f32 %v579, 0.0
      %v584 = vld [vmem:[%s6] sm:$0xff]
      %v585 = vld [vmem:[%s6 + $0x8] sm:$0xff]
      %v586 = vld [vmem:[%s6 + $0x10] sm:$0xff]
      %v587 = vld [vmem:[%s6 + $0x18] sm:$0xff]
      %v588 = vld [vmem:[%s7] sm:$0x1]
      %v590 = vlaneseq
      %v591 = vshrl.u32 %v590, 7
      %v592 = vsub.s32 0, %v591
      %v593 = vrot.slane %v588, %v592
      %v596 = vsel %vm443, %v582, 0
      %v599 = vsel %vm443, %v583, 0
      %601 = vmatprep.subr.mxu0 0.0
      %602 = vmatpush1.msra.mxu0 %v584
      %603 = vmatprep.subr.mxu0 0.0
      %604 = vmatpush1.msra.mxu0 %v585
      %605 = vmatprep.subr.mxu0 0.0
      %606 = vmatpush1.msra.mxu0 %v586
      %607 = vmatprep.subr.mxu0 0.0
      %608 = vmatpush1.msra.mxu0 %v587
      %609 = vmatprep.subr.mxu0 0.0
      %610 = vmatpush1.msra.mxu0 0.0
      %611 = vmatprep.subr.mxu0 0.0
      %612 = vmatpush1.msra.mxu0 0.0
      %613 = vmatprep.subr.mxu0 0.0
      %614 = vmatpush1.msra.mxu0 0.0
      %615 = vmatprep.subr.mxu0 0.0
      %616 = vmatpush1.msra.mxu0 0.0
      %617 = vmatprep.subr.mxu0 0.0
      %618 = vmatpush1.msra.mxu0 0.0
      %619 = vmatprep.subr.mxu0 0.0
      %620 = vmatpush1.msra.mxu0 0.0
      %621 = vmatprep.subr.mxu0 0.0
      %622 = vmatpush1.msra.mxu0 0.0
      %623 = vmatprep.subr.mxu0 0.0
      %624 = vmatpush1.msra.mxu0 0.0
      %625 = vmatprep.subr.mxu0 0.0
      %626 = vmatpush1.msra.mxu0 0.0
      %627 = vmatprep.subr.mxu0 0.0
      %628 = vmatpush1.msra.mxu0 0.0
      %629 = vmatprep.subr.mxu0 0.0
      %630 = vmatpush1.msra.mxu0 0.0
      %631 = vmatprep.subr.mxu0 0.0
      %632 = vmatpush1.msra.mxu0 0.0
      %633 = vmatprep.subr.mxu0 0.0
      %634 = vmatpush1.msra.mxu0 0.0
      %635 = vmatprep.subr.mxu0 0.0
      %636 = vmatpush1.msra.mxu0 0.0
      %637 = vmatprep.subr.mxu0 0.0
      %638 = vmatpush1.msra.mxu0 0.0
      %639 = vmatprep.subr.mxu0 0.0
      %640 = vmatpush1.msra.mxu0 0.0
      %641 = vmatprep.subr.mxu0 0.0
      %642 = vmatpush1.msra.mxu0 0.0
      %643 = vmatprep.subr.mxu0 0.0
      %644 = vmatpush1.msra.mxu0 0.0
      %645 = vmatprep.subr.mxu0 0.0
      %646 = vmatpush1.msra.mxu0 0.0
      %647 = vmatprep.subr.mxu0 0.0
      %648 = vmatpush1.msra.mxu0 0.0
      %649 = vmatprep.subr.mxu0 0.0
      %650 = vmatpush1.msra.mxu0 0.0
      %651 = vmatprep.subr.mxu0 0.0
      %652 = vmatpush1.msra.mxu0 0.0
      %653 = vmatprep.subr.mxu0 0.0
      %654 = vmatpush1.msra.mxu0 0.0
      %655 = vmatprep.subr.mxu0 0.0
      %656 = vmatpush1.msra.mxu0 0.0
      %657 = vmatprep.subr.mxu0 0.0
      %658 = vmatpush1.msra.mxu0 0.0
      %659 = vmatprep.subr.mxu0 0.0
      %660 = vmatpush1.msra.mxu0 0.0
      %661 = vmatprep.subr.mxu0 0.0
      %662 = vmatpush1.msra.mxu0 0.0
      %663 = vmatprep.subr.mxu0 0.0
      %664 = vmatpush1.msra.mxu0 0.0
      %665 = vmatprep.mubr.f32.mxu0 0.0
      %666 = vmatmul.mubr.f32.gmra.mrb[0].mxu0 %v596
      %v667 = vpop.f32.mrb[0].mxu0
      %v668 = vadd.f32 %v593, %v667
      %v669 = vpop.f32.mrb[0].mxu0
      %670 = vmatprep.mubr.f32.mxu0 0.0
      %671 = vmatmul.mubr.f32.gmra.mrb[0].mxu0 %v599
      %v672 = vpop.f32.mrb[0].mxu0
      %v673 = vadd.f32 %v593, %v672
      %v674 = vpop.f32.mrb[0].mxu0
      %675 = vdwg.mxu0
      %v676 = vadd.f32 %v449, %v668
      %v677 = vadd.f32 %v450, %v673
      %v678 = vmul.f32 %v676, %v349
      %v679 = vmul.f32 %v677, %v350
      %680 = vst.msk [vmem:[#allocation2 + $0x4] sm:$0xff] %vm443, %v678
      %681 = vst.msk [vmem:[#allocation2 + $0xc] sm:$0xff] %vm443, %v679
      %v682 = vld [vmem:[#allocation2 + $0x4] sm:$0xff]
      %v683 = vld [vmem:[#allocation2 + $0xc] sm:$0xff]
      %v684 = vld [vmem:[#allocation2 + $0x2] sm:$0xff]
      %v685 = vld [vmem:[#allocation2 + $0xa] sm:$0xff]
      %686 = vst.msk [vmem:[#allocation3] sm:$0xff] %vm443, %v684
      %687 = vst.msk [vmem:[#allocation3 + $0x8] sm:$0xff] %vm443, %v685
      %690 = vrot.lane.b32.xlu0 %v682, 32
      %v691 = vpop.permute.xlu0 %690
      %692 = vrot.lane.b32.xlu0 %v683, 32
      %v693 = vpop.permute.xlu0 %692
      %696 = vst.msk [vmem:[#allocation3] sm:$0xff] %vm463, %v691
      %697 = vst.msk [vmem:[#allocation3 + $0x8] sm:$0xff] %vm463, %v693
      %v698 = vld [vmem:[#allocation2 + $0x6] sm:$0xff]
      %v699 = vld [vmem:[#allocation2 + $0xe] sm:$0xff]
      %702 = vrot.lane.b32.xlu0 %v698, 64
      %v703 = vpop.permute.xlu0 %702
      %704 = vrot.lane.b32.xlu0 %v699, 64
      %v705 = vpop.permute.xlu0 %704
      %708 = vst.msk [vmem:[#allocation3] sm:$0xff] %vm476, %v703
      %709 = vst.msk [vmem:[#allocation3 + $0x8] sm:$0xff] %vm476, %v705
      %v710 = vld [vmem:[#allocation3] sm:$0xff]
      %v711 = vld [vmem:[#allocation3 + $0x8] sm:$0xff]
      %s712 = scalar_lea.vmem %s4, 96
      %v713 = vld [vmem:[%s712] sm:$0xff]
      %v714 = vld [vmem:[%s712 + $0x8] sm:$0xff]
      %v715 = vld [vmem:[%s712 + $0x10] sm:$0xff]
      %v716 = vld [vmem:[%s712 + $0x18] sm:$0xff]
      %v717 = vld [vmem:[%s712 + $0x20] sm:$0xff]
      %v718 = vld [vmem:[%s712 + $0x28] sm:$0xff]
      %v719 = vld [vmem:[%s712 + $0x30] sm:$0xff]
      %v720 = vld [vmem:[%s712 + $0x38] sm:$0xff]
      %v721 = vld [vmem:[%s712 + $0x40] sm:$0xff]
      %v722 = vld [vmem:[%s712 + $0x48] sm:$0xff]
      %v723 = vld [vmem:[%s712 + $0x50] sm:$0xff]
      %v724 = vld [vmem:[%s712 + $0x58] sm:$0xff]
      %s725 = scalar_lea.vmem %s5, 1
      %v726 = vld [vmem:[%s725] sm:$0x1]
      %v728 = vlaneseq
      %v729 = vshrl.u32 %v728, 7
      %v730 = vsub.s32 0, %v729
      %v731 = vrot.slane %v726, %v730
      %v734 = vsel %vm500, %v710, 0
      %v737 = vsel %vm500, %v711, 0
      %739 = vmatprep.subr.mxu0 0.0
      %740 = vmatpush1.msra.mxu0 %v713
      %741 = vmatprep.subr.mxu0 0.0
      %742 = vmatpush1.msra.mxu0 %v714
      %743 = vmatprep.subr.mxu0 0.0
      %744 = vmatpush1.msra.mxu0 %v715
      %745 = vmatprep.subr.mxu0 0.0
      %746 = vmatpush1.msra.mxu0 %v716
      %747 = vmatprep.subr.mxu0 0.0
      %748 = vmatpush1.msra.mxu0 %v717
      %749 = vmatprep.subr.mxu0 0.0
      %750 = vmatpush1.msra.mxu0 %v718
      %751 = vmatprep.subr.mxu0 0.0
      %752 = vmatpush1.msra.mxu0 %v719
      %753 = vmatprep.subr.mxu0 0.0
      %754 = vmatpush1.msra.mxu0 %v720
      %755 = vmatprep.subr.mxu0 0.0
      %756 = vmatpush1.msra.mxu0 %v721
      %757 = vmatprep.subr.mxu0 0.0
      %758 = vmatpush1.msra.mxu0 %v722
      %759 = vmatprep.subr.mxu0 0.0
      %760 = vmatpush1.msra.mxu0 %v723
      %761 = vmatprep.subr.mxu0 0.0
      %762 = vmatpush1.msra.mxu0 %v724
      %763 = vmatprep.subr.mxu0 0.0
      %764 = vmatpush1.msra.mxu0 0.0
      %765 = vmatprep.subr.mxu0 0.0
      %766 = vmatpush1.msra.mxu0 0.0
      %767 = vmatprep.subr.mxu0 0.0
      %768 = vmatpush1.msra.mxu0 0.0
      %769 = vmatprep.subr.mxu0 0.0
      %770 = vmatpush1.msra.mxu0 0.0
      %771 = vmatprep.subr.mxu0 0.0
      %772 = vmatpush1.msra.mxu0 0.0
      %773 = vmatprep.subr.mxu0 0.0
      %774 = vmatpush1.msra.mxu0 0.0
      %775 = vmatprep.subr.mxu0 0.0
      %776 = vmatpush1.msra.mxu0 0.0
      %777 = vmatprep.subr.mxu0 0.0
      %778 = vmatpush1.msra.mxu0 0.0
      %779 = vmatprep.subr.mxu0 0.0
      %780 = vmatpush1.msra.mxu0 0.0
      %781 = vmatprep.subr.mxu0 0.0
      %782 = vmatpush1.msra.mxu0 0.0
      %783 = vmatprep.subr.mxu0 0.0
      %784 = vmatpush1.msra.mxu0 0.0
      %785 = vmatprep.subr.mxu0 0.0
      %786 = vmatpush1.msra.mxu0 0.0
      %787 = vmatprep.subr.mxu0 0.0
      %788 = vmatpush1.msra.mxu0 0.0
      %789 = vmatprep.subr.mxu0 0.0
      %790 = vmatpush1.msra.mxu0 0.0
      %791 = vmatprep.subr.mxu0 0.0
      %792 = vmatpush1.msra.mxu0 0.0
      %793 = vmatprep.subr.mxu0 0.0
      %794 = vmatpush1.msra.mxu0 0.0
      %795 = vmatprep.subr.mxu0 0.0
      %796 = vmatpush1.msra.mxu0 0.0
      %797 = vmatprep.subr.mxu0 0.0
      %798 = vmatpush1.msra.mxu0 0.0
      %799 = vmatprep.subr.mxu0 0.0
      %800 = vmatpush1.msra.mxu0 0.0
      %801 = vmatprep.subr.mxu0 0.0
      %802 = vmatpush1.msra.mxu0 0.0
      %803 = vmatprep.mubr.f32.mxu0 0.0
      %804 = vmatmul.mubr.f32.gmra.mrb[0].mxu0 %v734
      %v805 = vpop.f32.mrb[0].mxu0
      %v806 = vadd.f32 %v731, %v805
      %v807 = vpop.f32.mrb[0].mxu0
      %808 = vmatprep.mubr.f32.mxu0 0.0
      %809 = vmatmul.mubr.f32.gmra.mrb[0].mxu0 %v737
      %v810 = vpop.f32.mrb[0].mxu0
      %v811 = vadd.f32 %v731, %v810
      %v812 = vpop.f32.mrb[0].mxu0
      %813 = vdwg.mxu0
      %v814 = vmax.f32 %v806, 0.0
      %v815 = vmax.f32 %v811, 0.0
      %s816 = scalar_lea.vmem %s6, 32
      %v817 = vld [vmem:[%s816] sm:$0xff]
      %v818 = vld [vmem:[%s816 + $0x8] sm:$0xff]
      %v819 = vld [vmem:[%s816 + $0x10] sm:$0xff]
      %v820 = vld [vmem:[%s816 + $0x18] sm:$0xff]
      %s821 = scalar_lea.vmem %s7, 1
      %v822 = vld [vmem:[%s821] sm:$0x1]
      %v824 = vlaneseq
      %v825 = vshrl.u32 %v824, 7
      %v826 = vsub.s32 0, %v825
      %v827 = vrot.slane %v822, %v826
      %v830 = vsel %vm443, %v814, 0
      %v833 = vsel %vm443, %v815, 0
      %835 = vmatprep.subr.mxu0 0.0
      %836 = vmatpush1.msra.mxu0 %v817
      %837 = vmatprep.subr.mxu0 0.0
      %838 = vmatpush1.msra.mxu0 %v818
      %839 = vmatprep.subr.mxu0 0.0
      %840 = vmatpush1.msra.mxu0 %v819
      %841 = vmatprep.subr.mxu0 0.0
      %842 = vmatpush1.msra.mxu0 %v820
      %843 = vmatprep.subr.mxu0 0.0
      %844 = vmatpush1.msra.mxu0 0.0
      %845 = vmatprep.subr.mxu0 0.0
      %846 = vmatpush1.msra.mxu0 0.0
      %847 = vmatprep.subr.mxu0 0.0
      %848 = vmatpush1.msra.mxu0 0.0
      %849 = vmatprep.subr.mxu0 0.0
      %850 = vmatpush1.msra.mxu0 0.0
      %851 = vmatprep.subr.mxu0 0.0
      %852 = vmatpush1.msra.mxu0 0.0
      %853 = vmatprep.subr.mxu0 0.0
      %854 = vmatpush1.msra.mxu0 0.0
      %855 = vmatprep.subr.mxu0 0.0
      %856 = vmatpush1.msra.mxu0 0.0
      %857 = vmatprep.subr.mxu0 0.0
      %858 = vmatpush1.msra.mxu0 0.0
      %859 = vmatprep.subr.mxu0 0.0
      %860 = vmatpush1.msra.mxu0 0.0
      %861 = vmatprep.subr.mxu0 0.0
      %862 = vmatpush1.msra.mxu0 0.0
      %863 = vmatprep.subr.mxu0 0.0
      %864 = vmatpush1.msra.mxu0 0.0
      %865 = vmatprep.subr.mxu0 0.0
      %866 = vmatpush1.msra.mxu0 0.0
      %867 = vmatprep.subr.mxu0 0.0
      %868 = vmatpush1.msra.mxu0 0.0
      %869 = vmatprep.subr.mxu0 0.0
      %870 = vmatpush1.msra.mxu0 0.0
      %871 = vmatprep.subr.mxu0 0.0
      %872 = vmatpush1.msra.mxu0 0.0
      %873 = vmatprep.subr.mxu0 0.0
      %874 = vmatpush1.msra.mxu0 0.0
      %875 = vmatprep.subr.mxu0 0.0
      %876 = vmatpush1.msra.mxu0 0.0
      %877 = vmatprep.subr.mxu0 0.0
      %878 = vmatpush1.msra.mxu0 0.0
      %879 = vmatprep.subr.mxu0 0.0
      %880 = vmatpush1.msra.mxu0 0.0
      %881 = vmatprep.subr.mxu0 0.0
      %882 = vmatpush1.msra.mxu0 0.0
      %883 = vmatprep.subr.mxu0 0.0
      %884 = vmatpush1.msra.mxu0 0.0
      %885 = vmatprep.subr.mxu0 0.0
      %886 = vmatpush1.msra.mxu0 0.0
      %887 = vmatprep.subr.mxu0 0.0
      %888 = vmatpush1.msra.mxu0 0.0
      %889 = vmatprep.subr.mxu0 0.0
      %890 = vmatpush1.msra.mxu0 0.0
      %891 = vmatprep.subr.mxu0 0.0
      %892 = vmatpush1.msra.mxu0 0.0
      %893 = vmatprep.subr.mxu0 0.0
      %894 = vmatpush1.msra.mxu0 0.0
      %895 = vmatprep.subr.mxu0 0.0
      %896 = vmatpush1.msra.mxu0 0.0
      %897 = vmatprep.subr.mxu0 0.0
      %898 = vmatpush1.msra.mxu0 0.0
      %899 = vmatprep.mubr.f32.mxu0 0.0
      %900 = vmatmul.mubr.f32.gmra.mrb[0].mxu0 %v830
      %v901 = vpop.f32.mrb[0].mxu0
      %v902 = vadd.f32 %v827, %v901
      %v903 = vpop.f32.mrb[0].mxu0
      %904 = vmatprep.mubr.f32.mxu0 0.0
      %905 = vmatmul.mubr.f32.gmra.mrb[0].mxu0 %v833
      %v906 = vpop.f32.mrb[0].mxu0
      %v907 = vadd.f32 %v827, %v906
      %v908 = vpop.f32.mrb[0].mxu0
      %909 = vdwg.mxu0
      %v910 = vadd.f32 %v682, %v902
      %v911 = vadd.f32 %v683, %v907
      %v912 = vmul.f32 %v910, %v349
      %v913 = vmul.f32 %v911, %v350
      %914 = vst.msk [vmem:[#allocation2 + $0x4] sm:$0xff] %vm443, %v912
      %915 = vst.msk [vmem:[#allocation2 + $0xc] sm:$0xff] %vm443, %v913
      %v916 = vld [vmem:[#allocation2 + $0x4] sm:$0xff]
      %v917 = vld [vmem:[#allocation2 + $0xc] sm:$0xff]
      %v918 = vld [vmem:[#allocation2] sm:$0xff]
      %v919 = vld [vmem:[#allocation2 + $0x8] sm:$0xff]
      %920 = vst.msk [vmem:[#allocation3] sm:$0xff] %vm443, %v918
      %921 = vst.msk [vmem:[#allocation3 + $0x8] sm:$0xff] %vm443, %v919
      %924 = vrot.lane.b32.xlu0 %v916, 32
      %v925 = vpop.permute.xlu0 %924
      %926 = vrot.lane.b32.xlu0 %v917, 32
      %v927 = vpop.permute.xlu0 %926
      %930 = vst.msk [vmem:[#allocation3] sm:$0xff] %vm463, %v925
      %931 = vst.msk [vmem:[#allocation3 + $0x8] sm:$0xff] %vm463, %v927
      %v932 = vld [vmem:[#allocation2 + $0x8] sm:$0xff]
      %v933 = vld [vmem:[#allocation2 + $0x10] sm:$0xff]
      %936 = vrot.lane.b32.xlu0 %v932, 64
      %v937 = vpop.permute.xlu0 %936
      %938 = vrot.lane.b32.xlu0 %v933, 64
      %v939 = vpop.permute.xlu0 %938
      %942 = vst.msk [vmem:[#allocation3] sm:$0xff] %vm476, %v937
      %943 = vst.msk [vmem:[#allocation3 + $0x8] sm:$0xff] %vm476, %v939
      %v944 = vld [vmem:[#allocation3] sm:$0xff]
      %v945 = vld [vmem:[#allocation3 + $0x8] sm:$0xff]
      %s946 = scalar_lea.vmem %s4, 192
      %v947 = vld [vmem:[%s946] sm:$0xff]
      %v948 = vld [vmem:[%s946 + $0x8] sm:$0xff]
      %v949 = vld [vmem:[%s946 + $0x10] sm:$0xff]
      %v950 = vld [vmem:[%s946 + $0x18] sm:$0xff]
      %v951 = vld [vmem:[%s946 + $0x20] sm:$0xff]
      %v952 = vld [vmem:[%s946 + $0x28] sm:$0xff]
      %v953 = vld [vmem:[%s946 + $0x30] sm:$0xff]
      %v954 = vld [vmem:[%s946 + $0x38] sm:$0xff]
      %v955 = vld [vmem:[%s946 + $0x40] sm:$0xff]
      %v956 = vld [vmem:[%s946 + $0x48] sm:$0xff]
      %v957 = vld [vmem:[%s946 + $0x50] sm:$0xff]
      %v958 = vld [vmem:[%s946 + $0x58] sm:$0xff]
      %s959 = scalar_lea.vmem %s5, 2
      %v960 = vld [vmem:[%s959] sm:$0x1]
      %v962 = vlaneseq
      %v963 = vshrl.u32 %v962, 7
      %v964 = vsub.s32 0, %v963
      %v965 = vrot.slane %v960, %v964
      %v968 = vsel %vm500, %v944, 0
      %v971 = vsel %vm500, %v945, 0
      %973 = vmatprep.subr.mxu0 0.0
      %974 = vmatpush1.msra.mxu0 %v947
      %975 = vmatprep.subr.mxu0 0.0
      %976 = vmatpush1.msra.mxu0 %v948
      %977 = vmatprep.subr.mxu0 0.0
      %978 = vmatpush1.msra.mxu0 %v949
      %979 = vmatprep.subr.mxu0 0.0
      %980 = vmatpush1.msra.mxu0 %v950
      %981 = vmatprep.subr.mxu0 0.0
      %982 = vmatpush1.msra.mxu0 %v951
      %983 = vmatprep.subr.mxu0 0.0
      %984 = vmatpush1.msra.mxu0 %v952
      %985 = vmatprep.subr.mxu0 0.0
      %986 = vmatpush1.msra.mxu0 %v953
      %987 = vmatprep.subr.mxu0 0.0
      %988 = vmatpush1.msra.mxu0 %v954
      %989 = vmatprep.subr.mxu0 0.0
      %990 = vmatpush1.msra.mxu0 %v955
      %991 = vmatprep.subr.mxu0 0.0
      %992 = vmatpush1.msra.mxu0 %v956
      %993 = vmatprep.subr.mxu0 0.0
      %994 = vmatpush1.msra.mxu0 %v957
      %995 = vmatprep.subr.mxu0 0.0
      %996 = vmatpush1.msra.mxu0 %v958
      %997 = vmatprep.subr.mxu0 0.0
      %998 = vmatpush1.msra.mxu0 0.0
      %999 = vmatprep.subr.mxu0 0.0
      %1000 = vmatpush1.msra.mxu0 0.0
      %1001 = vmatprep.subr.mxu0 0.0
      %1002 = vmatpush1.msra.mxu0 0.0
      %1003 = vmatprep.subr.mxu0 0.0
      %1004 = vmatpush1.msra.mxu0 0.0
      %1005 = vmatprep.subr.mxu0 0.0
      %1006 = vmatpush1.msra.mxu0 0.0
      %1007 = vmatprep.subr.mxu0 0.0
      %1008 = vmatpush1.msra.mxu0 0.0
      %1009 = vmatprep.subr.mxu0 0.0
      %1010 = vmatpush1.msra.mxu0 0.0
      %1011 = vmatprep.subr.mxu0 0.0
      %1012 = vmatpush1.msra.mxu0 0.0
      %1013 = vmatprep.subr.mxu0 0.0
      %1014 = vmatpush1.msra.mxu0 0.0
      %1015 = vmatprep.subr.mxu0 0.0
      %1016 = vmatpush1.msra.mxu0 0.0
      %1017 = vmatprep.subr.mxu0 0.0
      %1018 = vmatpush1.msra.mxu0 0.0
      %1019 = vmatprep.subr.mxu0 0.0
      %1020 = vmatpush1.msra.mxu0 0.0
      %1021 = vmatprep.subr.mxu0 0.0
      %1022 = vmatpush1.msra.mxu0 0.0
      %1023 = vmatprep.subr.mxu0 0.0
      %1024 = vmatpush1.msra.mxu0 0.0
      %1025 = vmatprep.subr.mxu0 0.0
      %1026 = vmatpush1.msra.mxu0 0.0
      %1027 = vmatprep.subr.mxu0 0.0
      %1028 = vmatpush1.msra.mxu0 0.0
      %1029 = vmatprep.subr.mxu0 0.0
      %1030 = vmatpush1.msra.mxu0 0.0
      %1031 = vmatprep.subr.mxu0 0.0
      %1032 = vmatpush1.msra.mxu0 0.0
      %1033 = vmatprep.subr.mxu0 0.0
      %1034 = vmatpush1.msra.mxu0 0.0
      %1035 = vmatprep.subr.mxu0 0.0
      %1036 = vmatpush1.msra.mxu0 0.0
      %1037 = vmatprep.mubr.f32.mxu0 0.0
      %1038 = vmatmul.mubr.f32.gmra.mrb[0].mxu0 %v968
      %v1039 = vpop.f32.mrb[0].mxu0
      %v1040 = vadd.f32 %v965, %v1039
      %v1041 = vpop.f32.mrb[0].mxu0
      %1042 = vmatprep.mubr.f32.mxu0 0.0
      %1043 = vmatmul.mubr.f32.gmra.mrb[0].mxu0 %v971
      %v1044 = vpop.f32.mrb[0].mxu0
      %v1045 = vadd.f32 %v965, %v1044
      %v1046 = vpop.f32.mrb[0].mxu0
      %1047 = vdwg.mxu0
      %v1048 = vmax.f32 %v1040, 0.0
      %v1049 = vmax.f32 %v1045, 0.0
      %s1050 = scalar_lea.vmem %s6, 64
      %v1051 = vld [vmem:[%s1050] sm:$0xff]
      %v1052 = vld [vmem:[%s1050 + $0x8] sm:$0xff]
      %v1053 = vld [vmem:[%s1050 + $0x10] sm:$0xff]
      %v1054 = vld [vmem:[%s1050 + $0x18] sm:$0xff]
      %s1055 = scalar_lea.vmem %s7, 2
      %v1056 = vld [vmem:[%s1055] sm:$0x1]
      %v1058 = vlaneseq
      %v1059 = vshrl.u32 %v1058, 7
      %v1060 = vsub.s32 0, %v1059
      %v1061 = vrot.slane %v1056, %v1060
      %v1064 = vsel %vm443, %v1048, 0
      %v1067 = vsel %vm443, %v1049, 0
      %1069 = vmatprep.subr.mxu0 0.0
      %1070 = vmatpush1.msra.mxu0 %v1051
      %1071 = vmatprep.subr.mxu0 0.0
      %1072 = vmatpush1.msra.mxu0 %v1052
      %1073 = vmatprep.subr.mxu0 0.0
      %1074 = vmatpush1.msra.mxu0 %v1053
      %1075 = vmatprep.subr.mxu0 0.0
      %1076 = vmatpush1.msra.mxu0 %v1054
      %1077 = vmatprep.subr.mxu0 0.0
      %1078 = vmatpush1.msra.mxu0 0.0
      %1079 = vmatprep.subr.mxu0 0.0
      %1080 = vmatpush1.msra.mxu0 0.0
      %1081 = vmatprep.subr.mxu0 0.0
      %1082 = vmatpush1.msra.mxu0 0.0
      %1083 = vmatprep.subr.mxu0 0.0
      %1084 = vmatpush1.msra.mxu0 0.0
      %1085 = vmatprep.subr.mxu0 0.0
      %1086 = vmatpush1.msra.mxu0 0.0
      %1087 = vmatprep.subr.mxu0 0.0
      %1088 = vmatpush1.msra.mxu0 0.0
      %1089 = vmatprep.subr.mxu0 0.0
      %1090 = vmatpush1.msra.mxu0 0.0
      %1091 = vmatprep.subr.mxu0 0.0
      %1092 = vmatpush1.msra.mxu0 0.0
      %1093 = vmatprep.subr.mxu0 0.0
      %1094 = vmatpush1.msra.mxu0 0.0
      %1095 = vmatprep.subr.mxu0 0.0
      %1096 = vmatpush1.msra.mxu0 0.0
      %1097 = vmatprep.subr.mxu0 0.0
      %1098 = vmatpush1.msra.mxu0 0.0
      %1099 = vmatprep.subr.mxu0 0.0
      %1100 = vmatpush1.msra.mxu0 0.0
      %1101 = vmatprep.subr.mxu0 0.0
      %1102 = vmatpush1.msra.mxu0 0.0
      %1103 = vmatprep.subr.mxu0 0.0
      %1104 = vmatpush1.msra.mxu0 0.0
      %1105 = vmatprep.subr.mxu0 0.0
      %1106 = vmatpush1.msra.mxu0 0.0
      %1107 = vmatprep.subr.mxu0 0.0
      %1108 = vmatpush1.msra.mxu0 0.0
      %1109 = vmatprep.subr.mxu0 0.0
      %1110 = vmatpush1.msra.mxu0 0.0
      %1111 = vmatprep.subr.mxu0 0.0
      %1112 = vmatpush1.msra.mxu0 0.0
      %1113 = vmatprep.subr.mxu0 0.0
      %1114 = vmatpush1.msra.mxu0 0.0
      %1115 = vmatprep.subr.mxu0 0.0
      %1116 = vmatpush1.msra.mxu0 0.0
      %1117 = vmatprep.subr.mxu0 0.0
      %1118 = vmatpush1.msra.mxu0 0.0
      %1119 = vmatprep.subr.mxu0 0.0
      %1120 = vmatpush1.msra.mxu0 0.0
      %1121 = vmatprep.subr.mxu0 0.0
      %1122 = vmatpush1.msra.mxu0 0.0
      %1123 = vmatprep.subr.mxu0 0.0
      %1124 = vmatpush1.msra.mxu0 0.0
      %1125 = vmatprep.subr.mxu0 0.0
      %1126 = vmatpush1.msra.mxu0 0.0
      %1127 = vmatprep.subr.mxu0 0.0
      %1128 = vmatpush1.msra.mxu0 0.0
      %1129 = vmatprep.subr.mxu0 0.0
      %1130 = vmatpush1.msra.mxu0 0.0
      %1131 = vmatprep.subr.mxu0 0.0
      %1132 = vmatpush1.msra.mxu0 0.0
      %1133 = vmatprep.mubr.f32.mxu0 0.0
      %1134 = vmatmul.mubr.f32.gmra.mrb[0].mxu0 %v1064
      %v1135 = vpop.f32.mrb[0].mxu0
      %v1136 = vadd.f32 %v1061, %v1135
      %v1137 = vpop.f32.mrb[0].mxu0
      %1138 = vmatprep.mubr.f32.mxu0 0.0
      %1139 = vmatmul.mubr.f32.gmra.mrb[0].mxu0 %v1067
      %v1140 = vpop.f32.mrb[0].mxu0
      %v1141 = vadd.f32 %v1061, %v1140
      %v1142 = vpop.f32.mrb[0].mxu0
      %1143 = vdwg.mxu0
      %v1144 = vadd.f32 %v916, %v1136
      %v1145 = vadd.f32 %v917, %v1141
      %v1146 = vmul.f32 %v1144, %v349
      %v1147 = vmul.f32 %v1145, %v350
      %1148 = vst.msk [vmem:[#allocation2 + $0x4] sm:$0xff] %vm443, %v1146
      %1149 = vst.msk [vmem:[#allocation2 + $0xc] sm:$0xff] %vm443, %v1147
      %v1150 = vld [vmem:[#allocation2 + $0x4] sm:$0xff]
      %v1151 = vld [vmem:[#allocation2 + $0xc] sm:$0xff]
      %v1152 = vld [vmem:[%s8] sm:$0xff]
      %v1153 = vld [vmem:[%s8 + $0x8] sm:$0xff]
      %v1154 = vld [vmem:[%s8 + $0x10] sm:$0xff]
      %v1155 = vld [vmem:[%s8 + $0x18] sm:$0xff]
      %v1156 = vld [vmem:[%s9] sm:$0x1]
      %v1158 = vlaneseq
      %v1159 = vshrl.u32 %v1158, 7
      %v1160 = vsub.s32 0, %v1159
      %v1161 = vrot.slane %v1156, %v1160
      %v1164 = vsel %vm443, %v1150, 0
      %v1167 = vsel %vm443, %v1151, 0
      %1169 = vmatprep.subr.mxu0 0.0
      %1170 = vmatpush1.msra.mxu0 %v1152
      %1171 = vmatprep.subr.mxu0 0.0
      %1172 = vmatpush1.msra.mxu0 %v1153
      %1173 = vmatprep.subr.mxu0 0.0
      %1174 = vmatpush1.msra.mxu0 %v1154
      %1175 = vmatprep.subr.mxu0 0.0
      %1176 = vmatpush1.msra.mxu0 %v1155
      %1177 = vmatprep.subr.mxu0 0.0
      %1178 = vmatpush1.msra.mxu0 0.0
      %1179 = vmatprep.subr.mxu0 0.0
      %1180 = vmatpush1.msra.mxu0 0.0
      %1181 = vmatprep.subr.mxu0 0.0
      %1182 = vmatpush1.msra.mxu0 0.0
      %1183 = vmatprep.subr.mxu0 0.0
      %1184 = vmatpush1.msra.mxu0 0.0
      %1185 = vmatprep.subr.mxu0 0.0
      %1186 = vmatpush1.msra.mxu0 0.0
      %1187 = vmatprep.subr.mxu0 0.0
      %1188 = vmatpush1.msra.mxu0 0.0
      %1189 = vmatprep.subr.mxu0 0.0
      %1190 = vmatpush1.msra.mxu0 0.0
      %1191 = vmatprep.subr.mxu0 0.0
      %1192 = vmatpush1.msra.mxu0 0.0
      %1193 = vmatprep.subr.mxu0 0.0
      %1194 = vmatpush1.msra.mxu0 0.0
      %1195 = vmatprep.subr.mxu0 0.0
      %1196 = vmatpush1.msra.mxu0 0.0
      %1197 = vmatprep.subr.mxu0 0.0
      %1198 = vmatpush1.msra.mxu0 0.0
      %1199 = vmatprep.subr.mxu0 0.0
      %1200 = vmatpush1.msra.mxu0 0.0
      %1201 = vmatprep.subr.mxu0 0.0
      %1202 = vmatpush1.msra.mxu0 0.0
      %1203 = vmatprep.subr.mxu0 0.0
      %1204 = vmatpush1.msra.mxu0 0.0
      %1205 = vmatprep.subr.mxu0 0.0
      %1206 = vmatpush1.msra.mxu0 0.0
      %1207 = vmatprep.subr.mxu0 0.0
      %1208 = vmatpush1.msra.mxu0 0.0
      %1209 = vmatprep.subr.mxu0 0.0
      %1210 = vmatpush1.msra.mxu0 0.0
      %1211 = vmatprep.subr.mxu0 0.0
      %1212 = vmatpush1.msra.mxu0 0.0
      %1213 = vmatprep.subr.mxu0 0.0
      %1214 = vmatpush1.msra.mxu0 0.0
      %1215 = vmatprep.subr.mxu0 0.0
      %1216 = vmatpush1.msra.mxu0 0.0
      %1217 = vmatprep.subr.mxu0 0.0
      %1218 = vmatpush1.msra.mxu0 0.0
      %1219 = vmatprep.subr.mxu0 0.0
      %1220 = vmatpush1.msra.mxu0 0.0
      %1221 = vmatprep.subr.mxu0 0.0
      %1222 = vmatpush1.msra.mxu0 0.0
      %1223 = vmatprep.subr.mxu0 0.0
      %1224 = vmatpush1.msra.mxu0 0.0
      %1225 = vmatprep.subr.mxu0 0.0
      %1226 = vmatpush1.msra.mxu0 0.0
      %1227 = vmatprep.subr.mxu0 0.0
      %1228 = vmatpush1.msra.mxu0 0.0
      %1229 = vmatprep.subr.mxu0 0.0
      %1230 = vmatpush1.msra.mxu0 0.0
      %1231 = vmatprep.subr.mxu0 0.0
      %1232 = vmatpush1.msra.mxu0 0.0
      %1233 = vmatprep.mubr.f32.mxu0 0.0
      %1234 = vmatmul.mubr.f32.gmra.mrb[0].mxu0 %v1164
      %v1235 = vpop.f32.mrb[0].mxu0
      %v1236 = vadd.f32 %v1161, %v1235
      %v1237 = vpop.f32.mrb[0].mxu0
      %1238 = vmatprep.mubr.f32.mxu0 0.0
      %1239 = vmatmul.mubr.f32.gmra.mrb[0].mxu0 %v1167
      %v1240 = vpop.f32.mrb[0].mxu0
      %v1241 = vadd.f32 %v1161, %v1240
      %v1242 = vpop.f32.mrb[0].mxu0
      %1243 = vdwg.mxu0
      %v1244 = vmul.f32 %v1236, %v349
      %v1245 = vmul.f32 %v1241, %v350
      %vm1246 = vcmask 48128
      %1247 = vst.msk [vmem:[%s339] sm:$0xff] %vm1246, %v1244
      %1248 = vst.msk [vmem:[%s339 + $0x8] sm:$0xff] %vm1246, %v1245
      %p1249 = scmp.lt.s32.totalorder %s27, 1
      %s1250 = scalar_select %p1249, %s27, 1
      %s1251 = smul.addr %s1250, 2
      %s1252 = smul.addr %s1251, 8
      %s1253 = scalar_lea.vmem %s10, %s1252
      // Predicated region
      $region57: #{tpu_custom_call.1} parent=55 // pred_check
        %p1254 = pneg %p239
      $region58: #{tpu_custom_call.1} parent=55 // pred_check_branch
        %1256 = sbr.rel (%p1254) target = $region60
      $region59: #{tpu_custom_call.1} parent=55 // pred_region
        _
      $region60: #{tpu_custom_call.1} parent=55 // pred_fallthru
        _
    $region56: #{tpu_custom_call.1} parent=5 // pred_fallthru
      _
    %p1257 = scmp.le.s32.totalorder 2, %s22
    // Predicated region
    $region61: #{tpu_custom_call.1} parent=5 // pred_check
      %p1258 = pneg %p1257
    $region62: #{tpu_custom_call.1} parent=5 // pred_check_branch
      %1260 = sbr.rel (%p1258) target = $region64
    $region63: #{tpu_custom_call.1} parent=5 // pred_region
      %s1261 = ssub.s32 %s22, 2
      // Predicated region
      $region65: #{tpu_custom_call.1} parent=63 // pred_check
        %p1262 = pneg %p245
      $region66: #{tpu_custom_call.1} parent=63 // pred_check_branch
        %1264 = sbr.rel (%p1262) target = $region68
      $region67: #{tpu_custom_call.1} parent=63 // pred_region
        %p1265 = scmp.lt.s32.totalorder %s28, 1
        %s1266 = scalar_select %p1265, %s28, 1
        %s1267 = smul.addr %s1266, 2
        %s1268 = smul.addr %s1267, 8
        %s1269 = scalar_lea.vmem %s10, %s1268
      $region68: #{tpu_custom_call.1} parent=63 // pred_fallthru
        _
    $region64: #{tpu_custom_call.1} parent=5 // pred_fallthru
      _
  $region6: #{tpu_custom_call.1} parent=0 // loop_footer
    %s26 = sadd.s32 1, %s22
  $region7: #{tpu_custom_call.1} parent=0 // loop_footer_branch
    %21 = sbr.rel target = $region3
  $region8: #{tpu_custom_call.1} parent=0 // loop_exit
    _

</llo_original>
